<compile_context>
chip_gen: v6e
topology: v6e:2x2x1
jax: 0.10.0
libtpu: 0.0.40
codegen_flags: <defaults>
</compile_context>

<pallas_src>
import jax
import jax.numpy as jnp
from jax.experimental import pallas as pl
from jax.experimental.pallas import tpu as pltpu


def _round_up(x, m):
    return (x + m - 1) // m * m


def _pick_batch_tile(B, rows_per_batch, target_rows=1024):
    """Largest divisor of B whose block (TB * ph * pw rows) stays <= target."""
    best = 1
    for d in range(1, B + 1):
        if B % d == 0 and d * rows_per_batch <= target_rows:
            best = d
    return best


def local_conv2d_relu(x, gamma, beta, mean, var, w_oihw, bias, local_h, local_w, eps=1e-5):
    """x: (B, C, H, W) float32 (NCHW, like PyTorch).
    gamma/beta/mean/var: (P, C) per-patch BN params (P = local_h*local_w).
    w_oihw: (P, Cout, C, KH, KW) per-patch conv weights (PyTorch OIHW layout).
    bias:   (P, Cout) per-patch conv bias.
    Returns (B, Cout, H, W)."""
    B, C, H, W = x.shape
    LH, LW = local_h, local_w
    assert H % LH == 0 and W % LW == 0, "H/W must divide evenly into patches"
    ph, pw = H // LH, W // LW
    P = LH * LW
    Cout, Cin, KH, KW = w_oihw.shape[1:]
    assert Cin == C
    assert KH % 2 == 1 and KW % 2 == 1, "only odd kernels (SAME pad, stride 1) supported"
    PH, PW = KH // 2, KW // 2            # SAME padding for stride-1 odd kernels
    Cout_pad = _round_up(Cout, 128)      # MXU-lane-dense matmul N dim

    TB = _pick_batch_tile(B, ph * pw)    # batch tile (M-tiling of the grid)
    MT = TB * ph * pw                    # matmul M rows per grid step
    M = B * ph * pw                      # total rows per patch

    # ---- glue: per-patch channels-last tiles, batch kept as a tileable axis ---
    xp = x.reshape(B, C, LH, ph, LW, pw)
    xp = jnp.transpose(xp, (2, 4, 0, 3, 5, 1))          # (LH, LW, B, ph, pw, C)
    xp = xp.reshape(P, B, ph, pw, C).astype(jnp.float32)

    # ---- glue: fold inference-BN into scale/shift; conv weights per tap -------
    inv_std = 1.0 / jnp.sqrt(var + eps)
    scale = (gamma * inv_std).reshape(P, 1, C).astype(jnp.float32)
    shift = (beta - mean * gamma * inv_std).reshape(P, 1, C).astype(jnp.float32)

    # (P, Cout, C, KH, KW) -> (P, KH, KW, C, Cout) -> (P, KH*KW, C, Cout_pad) bf16
    w_tap = jnp.transpose(w_oihw, (0, 3, 4, 2, 1)).reshape(P, KH * KW, C, Cout)
    w_tap = jnp.pad(w_tap, ((0, 0), (0, 0), (0, 0), (0, Cout_pad - Cout)))
    w_tap = w_tap.astype(jnp.bfloat16)
    b_col = bias.reshape(P, 1, Cout).astype(jnp.float32)   # unpadded: narrow HBM store

    # ---- Pallas kernel: BN + ReLU + KHxKW conv (pad=K//2) for one (patch, batch-tile)
    def kernel(x_ref, sc_ref, sh_ref, w_ref, b_ref, o_ref, pad_ref):
        # BN (inference, folded) + ReLU in f32 on the VPU.
        y = jnp.maximum(x_ref[...] * sc_ref[...] + sh_ref[...], 0.0)   # (TB, ph, pw, C)

        # Zero only the halo strips (interior is overwritten below).  Done every
        # step: the grid axes are 'parallel', so under megacore a core may never
        # execute step 0.
        pad_ref[:, 0:PH, :, :] = jnp.zeros((TB, PH, pw + 2 * PW, C), jnp.float32)
        pad_ref[:, ph + PH:ph + 2 * PH, :, :] = jnp.zeros((TB, PH, pw + 2 * PW, C), jnp.float32)
        pad_ref[:, :, 0:PW, :] = jnp.zeros((TB, ph + 2 * PH, PW, C), jnp.float32)
        pad_ref[:, :, pw + PW:pw + 2 * PW, :] = jnp.zeros((TB, ph + 2 * PH, PW, C), jnp.float32)
        pad_ref[:, PH:ph + PH, PW:pw + PW, :] = y

        # Per-tap accumulation: KH*KW matmuls (MT, C) x (C, Cout_pad), f32 acc.
        # No (M, K) im2col buffer, no whole-tile casts.
        acc = None
        for kh in range(KH):
            for kw in range(KW):
                t = kh * KW + kw
                tap = pad_ref[:, kh:kh + ph, kw:kw + pw, :].reshape(MT, C)
                z = jnp.dot(tap.astype(jnp.bfloat16), w_ref[t],
                            preferred_element_type=jnp.float32)        # (MT, Cout_pad)
                acc = z if acc is None else acc + z

        # Narrow final store: only the real Cout columns go back to HBM.
        o_ref[...] = acc[:, :Cout] + b_ref[...]

    flops = 2 * P * M * (KH * KW * C) * Cout_pad
    bytes_accessed = (xp.size * 4 + w_tap.size * 2 + scale.size * 4 * 2
                      + b_col.size * 4 + P * M * Cout * 4)
    cost = pl.CostEstimate(flops=int(flops), transcendentals=0,
                           bytes_accessed=int(bytes_accessed))

    out = pl.pallas_call(
        kernel,
        out_shape=jax.ShapeDtypeStruct((P, M, Cout), jnp.float32),
        grid_spec=pltpu.PrefetchScalarGridSpec(
            num_scalar_prefetch=0,
            grid=(P, B // TB),
            in_specs=[
                pl.BlockSpec((pl.Squeezed(), TB, ph, pw, C), lambda p, m: (p, m, 0, 0, 0)),
                pl.BlockSpec((pl.Squeezed(), 1, C), lambda p, m: (p, 0, 0)),
                pl.BlockSpec((pl.Squeezed(), 1, C), lambda p, m: (p, 0, 0)),
                pl.BlockSpec((pl.Squeezed(), KH * KW, C, Cout_pad), lambda p, m: (p, 0, 0, 0)),
                pl.BlockSpec((pl.Squeezed(), 1, Cout), lambda p, m: (p, 0, 0)),
            ],
            out_specs=pl.BlockSpec((pl.Squeezed(), MT, Cout), lambda p, m: (p, m, 0)),
            scratch_shapes=[
                pltpu.VMEM((TB, ph + 2 * PH, pw + 2 * PW, C), jnp.float32),  # padded halo
            ],
        ),
        compiler_params=pltpu.CompilerParams(
            dimension_semantics=("parallel", "parallel")),
        cost_estimate=cost,
    )(xp, scale, shift, w_tap, b_col)

    # ---- glue: reassemble patches back to NCHW ---------------------------------
    out = out.reshape(LH, LW, B, ph, pw, Cout)
    out = jnp.transpose(out, (2, 5, 0, 3, 1, 4)).reshape(B, Cout, H, W)
    return out


def reference(x, gamma, beta, mean, var, w_oihw, bias, LH, LW, eps=1e-5):
    """Pure-JAX reference mirroring the PyTorch forward (inference-mode BN)."""
    B, C, H, W = x.shape
    ph, pw = H // LH, W // LW
    KH, KW = w_oihw.shape[-2:]
    rows = []
    for i in range(LH):
        cols = []
        for j in range(LW):
            p = i * LW + j
            xp = x[:, :, i * ph:(i + 1) * ph, j * pw:(j + 1) * pw]
            s = (gamma[p] / jnp.sqrt(var[p] + eps))[None, :, None, None]
            y = (xp - mean[p][None, :, None, None]) * s + beta[p][None, :, None, None]
            y = jnp.maximum(y, 0.0)
            co = jax.lax.conv_general_dilated(
                y, w_oihw[p], window_strides=(1, 1),
                padding=((KH // 2, KH // 2), (KW // 2, KW // 2)),
                dimension_numbers=('NCHW', 'OIHW', 'NCHW'))
            cols.append(co + bias[p][None, :, None, None])
        rows.append(jnp.concatenate(cols, axis=3))
    return jnp.concatenate(rows, axis=2)


if __name__ == "__main__":
    B, C, Cout, H, W = 2, 4, 8, 16, 16
    LH, LW, ksize = 2, 2, 3
    P = LH * LW

    key = jax.random.PRNGKey(0)
    ks = jax.random.split(key, 7)
    x = jax.random.normal(ks[0], (B, C, H, W), jnp.float32)
    gamma = 1.0 + 0.1 * jax.random.normal(ks[1], (P, C), jnp.float32)
    beta = 0.1 * jax.random.normal(ks[2], (P, C), jnp.float32)
    mean = 0.1 * jax.random.normal(ks[3], (P, C), jnp.float32)
    var = jax.random.uniform(ks[4], (P, C), jnp.float32, minval=0.5, maxval=1.5)
    fan_in = float(C * ksize * ksize)
    w = jax.random.normal(ks[5], (P, Cout, C, ksize, ksize), jnp.float32) / (fan_in ** 0.5)
    b = 0.1 * jax.random.normal(ks[6], (P, Cout), jnp.float32)

    out = local_conv2d_relu(x, gamma, beta, mean, var, w, b, LH, LW)
    out = jax.block_until_ready(out)

    ref = reference(x, gamma, beta, mean, var, w, b, LH, LW)
    assert out.shape == (B, Cout, H, W), out.shape
    assert jnp.allclose(out, ref, atol=2e-2, rtol=2e-2), \
        f"max abs diff = {jnp.max(jnp.abs(out - ref))}"

    print("KERNEL_OK")
</pallas_src>

<mosaic_0001>
module attributes {stable_mosaic.version = 11 : i64} {
  func.func @kernel(%arg0: i32, %arg1: i32, %arg2: memref<1x2x8x8x4xf32, #tpu.memory_space<vmem>>, %arg3: memref<1x1x4xf32, #tpu.memory_space<vmem>>, %arg4: memref<1x1x4xf32, #tpu.memory_space<vmem>>, %arg5: memref<1x9x4x128xbf16, #tpu.memory_space<vmem>>, %arg6: memref<1x1x8xf32, #tpu.memory_space<vmem>>, %arg7: memref<1x128x8xf32, #tpu.memory_space<vmem>>, %arg8: memref<2x10x10x4xf32, #tpu.memory_space<vmem>>) attributes {dimension_semantics = [#tpu.dimension_semantics<parallel>, #tpu.dimension_semantics<parallel>], iteration_bounds = array<i64: 4, 1>, scalar_prefetch = 0 : i64, scratch_operands = 1 : i64, tpu.core_type = #tpu.core_type<tc>, window_params = [{transform_indices = @transform_0, window_bounds = array<i64: 1, 2, 8, 8, 4>}, {transform_indices = @transform_1, window_bounds = array<i64: 1, 1, 4>}, {transform_indices = @transform_2, window_bounds = array<i64: 1, 1, 4>}, {transform_indices = @transform_3, window_bounds = array<i64: 1, 9, 4, 128>}, {transform_indices = @transform_4, window_bounds = array<i64: 1, 1, 8>}, {transform_indices = @transform_5, window_bounds = array<i64: 1, 128, 8>}]} {
    %c0 = arith.constant 0 : index
    %c0_0 = arith.constant 0 : index
    %c0_1 = arith.constant 0 : index
    %c0_2 = arith.constant 0 : index
    %c0_3 = arith.constant 0 : index
    %0 = vector.load %arg2[%c0, %c0_0, %c0_1, %c0_2, %c0_3] : memref<1x2x8x8x4xf32, #tpu.memory_space<vmem>>, vector<1x2x8x8x4xf32>
    %1 = vector.shape_cast %0 : vector<1x2x8x8x4xf32> to vector<2x8x8x4xf32>
    %c0_4 = arith.constant 0 : index
    %c0_5 = arith.constant 0 : index
    %c0_6 = arith.constant 0 : index
    %2 = vector.load %arg3[%c0_4, %c0_5, %c0_6] : memref<1x1x4xf32, #tpu.memory_space<vmem>>, vector<1x1x4xf32>
    %3 = vector.shape_cast %2 : vector<1x1x4xf32> to vector<1x4xf32>
    %4 = vector.shape_cast %3 : vector<1x4xf32> to vector<1x1x1x4xf32>
    %5 = vector.broadcast %4 : vector<1x1x1x4xf32> to vector<2x8x8x4xf32>
    %6 = arith.mulf %1, %5 : vector<2x8x8x4xf32>
    %c0_7 = arith.constant 0 : index
    %c0_8 = arith.constant 0 : index
    %c0_9 = arith.constant 0 : index
    %7 = vector.load %arg4[%c0_7, %c0_8, %c0_9] : memref<1x1x4xf32, #tpu.memory_space<vmem>>, vector<1x1x4xf32>
    %8 = vector.shape_cast %7 : vector<1x1x4xf32> to vector<1x4xf32>
    %9 = vector.shape_cast %8 : vector<1x4xf32> to vector<1x1x1x4xf32>
    %10 = vector.broadcast %9 : vector<1x1x1x4xf32> to vector<2x8x8x4xf32>
    %11 = arith.addf %6, %10 : vector<2x8x8x4xf32>
    %cst = arith.constant 0.000000e+00 : f32
    %12 = vector.broadcast %cst : f32 to vector<2x8x8x4xf32>
    %13 = arith.maximumf %11, %12 : vector<2x8x8x4xf32>
    %cst_10 = arith.constant 0.000000e+00 : f32
    %14 = vector.broadcast %cst_10 : f32 to vector<2x1x10x4xf32>
    %c0_11 = arith.constant 0 : index
    %c0_12 = arith.constant 0 : index
    %c0_13 = arith.constant 0 : index
    %c0_14 = arith.constant 0 : index
    %15 = vector.load %arg8[%c0_11, %c0_12, %c0_13, %c0_14] : memref<2x10x10x4xf32, #tpu.memory_space<vmem>>, vector<2x1x10x4xf32>
    tpu.vector_store %arg8[%c0_11, %c0_12, %c0_13, %c0_14], %14 {strides = array<i32>} : memref<2x10x10x4xf32, #tpu.memory_space<vmem>>, vector<2x1x10x4xf32>,
    %cst_15 = arith.constant 0.000000e+00 : f32
    %16 = vector.broadcast %cst_15 : f32 to vector<2x1x10x4xf32>
    %c0_16 = arith.constant 0 : index
    %c9 = arith.constant 9 : index
    %c0_17 = arith.constant 0 : index
    %c0_18 = arith.constant 0 : index
    %17 = vector.load %arg8[%c0_16, %c9, %c0_17, %c0_18] : memref<2x10x10x4xf32, #tpu.memory_space<vmem>>, vector<2x1x10x4xf32>
    tpu.vector_store %arg8[%c0_16, %c9, %c0_17, %c0_18], %16 {strides = array<i32>} : memref<2x10x10x4xf32, #tpu.memory_space<vmem>>, vector<2x1x10x4xf32>,
    %cst_19 = arith.constant 0.000000e+00 : f32
    %18 = vector.broadcast %cst_19 : f32 to vector<2x10x1x4xf32>
    %c0_20 = arith.constant 0 : index
    %c0_21 = arith.constant 0 : index
    %c0_22 = arith.constant 0 : index
    %c0_23 = arith.constant 0 : index
    %19 = vector.load %arg8[%c0_20, %c0_21, %c0_22, %c0_23] : memref<2x10x10x4xf32, #tpu.memory_space<vmem>>, vector<2x10x1x4xf32>
    tpu.vector_store %arg8[%c0_20, %c0_21, %c0_22, %c0_23], %18 {strides = array<i32>} : memref<2x10x10x4xf32, #tpu.memory_space<vmem>>, vector<2x10x1x4xf32>,
    %cst_24 = arith.constant 0.000000e+00 : f32
    %20 = vector.broadcast %cst_24 : f32 to vector<2x10x1x4xf32>
    %c0_25 = arith.constant 0 : index
    %c0_26 = arith.constant 0 : index
    %c9_27 = arith.constant 9 : index
    %c0_28 = arith.constant 0 : index
    %21 = vector.load %arg8[%c0_25, %c0_26, %c9_27, %c0_28] : memref<2x10x10x4xf32, #tpu.memory_space<vmem>>, vector<2x10x1x4xf32>
    tpu.vector_store %arg8[%c0_25, %c0_26, %c9_27, %c0_28], %20 {strides = array<i32>} : memref<2x10x10x4xf32, #tpu.memory_space<vmem>>, vector<2x10x1x4xf32>,
    %c0_29 = arith.constant 0 : index
    %c1 = arith.constant 1 : index
    %c1_30 = arith.constant 1 : index
    %c0_31 = arith.constant 0 : index
    %22 = vector.load %arg8[%c0_29, %c1, %c1_30, %c0_31] : memref<2x10x10x4xf32, #tpu.memory_space<vmem>>, vector<2x8x8x4xf32>
    tpu.vector_store %arg8[%c0_29, %c1, %c1_30, %c0_31], %13 {strides = array<i32>} : memref<2x10x10x4xf32, #tpu.memory_space<vmem>>, vector<2x8x8x4xf32>,
    %c0_32 = arith.constant 0 : index
    %c0_33 = arith.constant 0 : index
    %c0_34 = arith.constant 0 : index
    %c0_35 = arith.constant 0 : index
    %23 = vector.load %arg8[%c0_32, %c0_33, %c0_34, %c0_35] : memref<2x10x10x4xf32, #tpu.memory_space<vmem>>, vector<2x8x8x4xf32>
    %24 = vector.shape_cast %23 : vector<2x8x8x4xf32> to vector<128x4xf32>
    %25 = arith.truncf %24 : vector<128x4xf32> to vector<128x4xbf16>
    %c0_36 = arith.constant 0 : index
    %c0_37 = arith.constant 0 : index
    %c0_38 = arith.constant 0 : index
    %c0_39 = arith.constant 0 : index
    %26 = vector.load %arg5[%c0_36, %c0_37, %c0_38, %c0_39] : memref<1x9x4x128xbf16, #tpu.memory_space<vmem>>, vector<1x1x4x128xbf16>
    %27 = vector.shape_cast %26 : vector<1x1x4x128xbf16> to vector<4x128xbf16>
    %cst_40 = arith.constant dense<0.000000e+00> : vector<128x128xf32>
    %28 = tpu.matmul %25, %27, %cst_40 {dimension_numbers = #tpu.dot_dimension_numbers<[1], [0], [0], [1], [0, 0, 1, 1], [], []>} : vector<128x4xbf16>, vector<4x128xbf16>, vector<128x128xf32> -> vector<128x128xf32>
    %c0_41 = arith.constant 0 : index
    %c0_42 = arith.constant 0 : index
    %c1_43 = arith.constant 1 : index
    %c0_44 = arith.constant 0 : index
    %29 = vector.load %arg8[%c0_41, %c0_42, %c1_43, %c0_44] : memref<2x10x10x4xf32, #tpu.memory_space<vmem>>, vector<2x8x8x4xf32>
    %30 = vector.shape_cast %29 : vector<2x8x8x4xf32> to vector<128x4xf32>
    %31 = arith.truncf %30 : vector<128x4xf32> to vector<128x4xbf16>
    %c0_45 = arith.constant 0 : index
    %c1_46 = arith.constant 1 : index
    %c0_47 = arith.constant 0 : index
    %c0_48 = arith.constant 0 : index
    %32 = vector.load %arg5[%c0_45, %c1_46, %c0_47, %c0_48] : memref<1x9x4x128xbf16, #tpu.memory_space<vmem>>, vector<1x1x4x128xbf16>
    %33 = vector.shape_cast %32 : vector<1x1x4x128xbf16> to vector<4x128xbf16>
    %cst_49 = arith.constant dense<0.000000e+00> : vector<128x128xf32>
    %34 = tpu.matmul %31, %33, %cst_49 {dimension_numbers = #tpu.dot_dimension_numbers<[1], [0], [0], [1], [0, 0, 1, 1], [], []>} : vector<128x4xbf16>, vector<4x128xbf16>, vector<128x128xf32> -> vector<128x128xf32>
    %35 = arith.addf %28, %34 : vector<128x128xf32>
    %c0_50 = arith.constant 0 : index
    %c0_51 = arith.constant 0 : index
    %c2 = arith.constant 2 : index
    %c0_52 = arith.constant 0 : index
    %36 = vector.load %arg8[%c0_50, %c0_51, %c2, %c0_52] : memref<2x10x10x4xf32, #tpu.memory_space<vmem>>, vector<2x8x8x4xf32>
    %37 = vector.shape_cast %36 : vector<2x8x8x4xf32> to vector<128x4xf32>
    %38 = arith.truncf %37 : vector<128x4xf32> to vector<128x4xbf16>
    %c0_53 = arith.constant 0 : index
    %c2_54 = arith.constant 2 : index
    %c0_55 = arith.constant 0 : index
    %c0_56 = arith.constant 0 : index
    %39 = vector.load %arg5[%c0_53, %c2_54, %c0_55, %c0_56] : memref<1x9x4x128xbf16, #tpu.memory_space<vmem>>, vector<1x1x4x128xbf16>
    %40 = vector.shape_cast %39 : vector<1x1x4x128xbf16> to vector<4x128xbf16>
    %cst_57 = arith.constant dense<0.000000e+00> : vector<128x128xf32>
    %41 = tpu.matmul %38, %40, %cst_57 {dimension_numbers = #tpu.dot_dimension_numbers<[1], [0], [0], [1], [0, 0, 1, 1], [], []>} : vector<128x4xbf16>, vector<4x128xbf16>, vector<128x128xf32> -> vector<128x128xf32>
    %42 = arith.addf %35, %41 : vector<128x128xf32>
    %c0_58 = arith.constant 0 : index
    %c1_59 = arith.constant 1 : index
    %c0_60 = arith.constant 0 : index
    %c0_61 = arith.constant 0 : index
    %43 = vector.load %arg8[%c0_58, %c1_59, %c0_60, %c0_61] : memref<2x10x10x4xf32, #tpu.memory_space<vmem>>, vector<2x8x8x4xf32>
    %44 = vector.shape_cast %43 : vector<2x8x8x4xf32> to vector<128x4xf32>
    %45 = arith.truncf %44 : vector<128x4xf32> to vector<128x4xbf16>
    %c0_62 = arith.constant 0 : index
    %c3 = arith.constant 3 : index
    %c0_63 = arith.constant 0 : index
    %c0_64 = arith.constant 0 : index
    %46 = vector.load %arg5[%c0_62, %c3, %c0_63, %c0_64] : memref<1x9x4x128xbf16, #tpu.memory_space<vmem>>, vector<1x1x4x128xbf16>
    %47 = vector.shape_cast %46 : vector<1x1x4x128xbf16> to vector<4x128xbf16>
    %cst_65 = arith.constant dense<0.000000e+00> : vector<128x128xf32>
    %48 = tpu.matmul %45, %47, %cst_65 {dimension_numbers = #tpu.dot_dimension_numbers<[1], [0], [0], [1], [0, 0, 1, 1], [], []>} : vector<128x4xbf16>, vector<4x128xbf16>, vector<128x128xf32> -> vector<128x128xf32>
    %49 = arith.addf %42, %48 : vector<128x128xf32>
    %c0_66 = arith.constant 0 : index
    %c1_67 = arith.constant 1 : index
    %c1_68 = arith.constant 1 : index
    %c0_69 = arith.constant 0 : index
    %50 = vector.load %arg8[%c0_66, %c1_67, %c1_68, %c0_69] : memref<2x10x10x4xf32, #tpu.memory_space<vmem>>, vector<2x8x8x4xf32>
    %51 = vector.shape_cast %50 : vector<2x8x8x4xf32> to vector<128x4xf32>
    %52 = arith.truncf %51 : vector<128x4xf32> to vector<128x4xbf16>
    %c0_70 = arith.constant 0 : index
    %c4 = arith.constant 4 : index
    %c0_71 = arith.constant 0 : index
    %c0_72 = arith.constant 0 : index
    %53 = vector.load %arg5[%c0_70, %c4, %c0_71, %c0_72] : memref<1x9x4x128xbf16, #tpu.memory_space<vmem>>, vector<1x1x4x128xbf16>
    %54 = vector.shape_cast %53 : vector<1x1x4x128xbf16> to vector<4x128xbf16>
    %cst_73 = arith.constant dense<0.000000e+00> : vector<128x128xf32>
    %55 = tpu.matmul %52, %54, %cst_73 {dimension_numbers = #tpu.dot_dimension_numbers<[1], [0], [0], [1], [0, 0, 1, 1], [], []>} : vector<128x4xbf16>, vector<4x128xbf16>, vector<128x128xf32> -> vector<128x128xf32>
    %56 = arith.addf %49, %55 : vector<128x128xf32>
    %c0_74 = arith.constant 0 : index
    %c1_75 = arith.constant 1 : index
    %c2_76 = arith.constant 2 : index
    %c0_77 = arith.constant 0 : index
    %57 = vector.load %arg8[%c0_74, %c1_75, %c2_76, %c0_77] : memref<2x10x10x4xf32, #tpu.memory_space<vmem>>, vector<2x8x8x4xf32>
    %58 = vector.shape_cast %57 : vector<2x8x8x4xf32> to vector<128x4xf32>
    %59 = arith.truncf %58 : vector<128x4xf32> to vector<128x4xbf16>
    %c0_78 = arith.constant 0 : index
    %c5 = arith.constant 5 : index
    %c0_79 = arith.constant 0 : index
    %c0_80 = arith.constant 0 : index
    %60 = vector.load %arg5[%c0_78, %c5, %c0_79, %c0_80] : memref<1x9x4x128xbf16, #tpu.memory_space<vmem>>, vector<1x1x4x128xbf16>
    %61 = vector.shape_cast %60 : vector<1x1x4x128xbf16> to vector<4x128xbf16>
    %cst_81 = arith.constant dense<0.000000e+00> : vector<128x128xf32>
    %62 = tpu.matmul %59, %61, %cst_81 {dimension_numbers = #tpu.dot_dimension_numbers<[1], [0], [0], [1], [0, 0, 1, 1], [], []>} : vector<128x4xbf16>, vector<4x128xbf16>, vector<128x128xf32> -> vector<128x128xf32>
    %63 = arith.addf %56, %62 : vector<128x128xf32>
    %c0_82 = arith.constant 0 : index
    %c2_83 = arith.constant 2 : index
    %c0_84 = arith.constant 0 : index
    %c0_85 = arith.constant 0 : index
    %64 = vector.load %arg8[%c0_82, %c2_83, %c0_84, %c0_85] : memref<2x10x10x4xf32, #tpu.memory_space<vmem>>, vector<2x8x8x4xf32>
    %65 = vector.shape_cast %64 : vector<2x8x8x4xf32> to vector<128x4xf32>
    %66 = arith.truncf %65 : vector<128x4xf32> to vector<128x4xbf16>
    %c0_86 = arith.constant 0 : index
    %c6 = arith.constant 6 : index
    %c0_87 = arith.constant 0 : index
    %c0_88 = arith.constant 0 : index
    %67 = vector.load %arg5[%c0_86, %c6, %c0_87, %c0_88] : memref<1x9x4x128xbf16, #tpu.memory_space<vmem>>, vector<1x1x4x128xbf16>
    %68 = vector.shape_cast %67 : vector<1x1x4x128xbf16> to vector<4x128xbf16>
    %cst_89 = arith.constant dense<0.000000e+00> : vector<128x128xf32>
    %69 = tpu.matmul %66, %68, %cst_89 {dimension_numbers = #tpu.dot_dimension_numbers<[1], [0], [0], [1], [0, 0, 1, 1], [], []>} : vector<128x4xbf16>, vector<4x128xbf16>, vector<128x128xf32> -> vector<128x128xf32>
    %70 = arith.addf %63, %69 : vector<128x128xf32>
    %c0_90 = arith.constant 0 : index
    %c2_91 = arith.constant 2 : index
    %c1_92 = arith.constant 1 : index
    %c0_93 = arith.constant 0 : index
    %71 = vector.load %arg8[%c0_90, %c2_91, %c1_92, %c0_93] : memref<2x10x10x4xf32, #tpu.memory_space<vmem>>, vector<2x8x8x4xf32>
    %72 = vector.shape_cast %71 : vector<2x8x8x4xf32> to vector<128x4xf32>
    %73 = arith.truncf %72 : vector<128x4xf32> to vector<128x4xbf16>
    %c0_94 = arith.constant 0 : index
    %c7 = arith.constant 7 : index
    %c0_95 = arith.constant 0 : index
    %c0_96 = arith.constant 0 : index
    %74 = vector.load %arg5[%c0_94, %c7, %c0_95, %c0_96] : memref<1x9x4x128xbf16, #tpu.memory_space<vmem>>, vector<1x1x4x128xbf16>
    %75 = vector.shape_cast %74 : vector<1x1x4x128xbf16> to vector<4x128xbf16>
    %cst_97 = arith.constant dense<0.000000e+00> : vector<128x128xf32>
    %76 = tpu.matmul %73, %75, %cst_97 {dimension_numbers = #tpu.dot_dimension_numbers<[1], [0], [0], [1], [0, 0, 1, 1], [], []>} : vector<128x4xbf16>, vector<4x128xbf16>, vector<128x128xf32> -> vector<128x128xf32>
    %77 = arith.addf %70, %76 : vector<128x128xf32>
    %c0_98 = arith.constant 0 : index
    %c2_99 = arith.constant 2 : index
    %c2_100 = arith.constant 2 : index
    %c0_101 = arith.constant 0 : index
    %78 = vector.load %arg8[%c0_98, %c2_99, %c2_100, %c0_101] : memref<2x10x10x4xf32, #tpu.memory_space<vmem>>, vector<2x8x8x4xf32>
    %79 = vector.shape_cast %78 : vector<2x8x8x4xf32> to vector<128x4xf32>
    %80 = arith.truncf %79 : vector<128x4xf32> to vector<128x4xbf16>
    %c0_102 = arith.constant 0 : index
    %c8 = arith.constant 8 : index
    %c0_103 = arith.constant 0 : index
    %c0_104 = arith.constant 0 : index
    %81 = vector.load %arg5[%c0_102, %c8, %c0_103, %c0_104] : memref<1x9x4x128xbf16, #tpu.memory_space<vmem>>, vector<1x1x4x128xbf16>
    %82 = vector.shape_cast %81 : vector<1x1x4x128xbf16> to vector<4x128xbf16>
    %cst_105 = arith.constant dense<0.000000e+00> : vector<128x128xf32>
    %83 = tpu.matmul %80, %82, %cst_105 {dimension_numbers = #tpu.dot_dimension_numbers<[1], [0], [0], [1], [0, 0, 1, 1], [], []>} : vector<128x4xbf16>, vector<4x128xbf16>, vector<128x128xf32> -> vector<128x128xf32>
    %84 = arith.addf %77, %83 : vector<128x128xf32>
    %85 = vector.extract_strided_slice %84 {offsets = [0, 0], sizes = [128, 8], strides = [1, 1]} : vector<128x128xf32> to vector<128x8xf32>
    %c0_106 = arith.constant 0 : index
    %c0_107 = arith.constant 0 : index
    %c0_108 = arith.constant 0 : index
    %86 = vector.load %arg6[%c0_106, %c0_107, %c0_108] : memref<1x1x8xf32, #tpu.memory_space<vmem>>, vector<1x1x8xf32>
    %87 = vector.shape_cast %86 : vector<1x1x8xf32> to vector<1x8xf32>
    %88 = vector.broadcast %87 : vector<1x8xf32> to vector<128x8xf32>
    %89 = arith.addf %85, %88 : vector<128x8xf32>
    %c0_109 = arith.constant 0 : index
    %c0_110 = arith.constant 0 : index
    %c0_111 = arith.constant 0 : index
    %90 = vector.load %arg7[%c0_109, %c0_110, %c0_111] : memref<1x128x8xf32, #tpu.memory_space<vmem>>, vector<1x128x8xf32>
    %91 = vector.shape_cast %90 : vector<1x128x8xf32> to vector<128x8xf32>
    %92 = vector.shape_cast %89 : vector<128x8xf32> to vector<1x128x8xf32>
    tpu.vector_store %arg7[%c0_109, %c0_110, %c0_111], %92 {strides = array<i32>} : memref<1x128x8xf32, #tpu.memory_space<vmem>>, vector<1x128x8xf32>,
    return
  }
  func.func @transform_0(%arg0: i32, %arg1: i32) -> (i32, i32, i32, i32, i32) {
    %c0_i32 = arith.constant 0 : i32
    %c0_i32_0 = arith.constant 0 : i32
    %c0_i32_1 = arith.constant 0 : i32
    %c0_i32_2 = arith.constant 0 : i32
    return %arg0, %arg1, %c0_i32, %c0_i32_0, %c0_i32_1 : i32, i32, i32, i32, i32
  }
  func.func @transform_1(%arg0: i32, %arg1: i32) -> (i32, i32, i32) {
    %c0_i32 = arith.constant 0 : i32
    %c0_i32_0 = arith.constant 0 : i32
    %c0_i32_1 = arith.constant 0 : i32
    return %arg0, %c0_i32, %c0_i32_0 : i32, i32, i32
  }
  func.func @transform_2(%arg0: i32, %arg1: i32) -> (i32, i32, i32) {
    %c0_i32 = arith.constant 0 : i32
    %c0_i32_0 = arith.constant 0 : i32
    %c0_i32_1 = arith.constant 0 : i32
    return %arg0, %c0_i32, %c0_i32_0 : i32, i32, i32
  }
  func.func @transform_3(%arg0: i32, %arg1: i32) -> (i32, i32, i32, i32) {
    %c0_i32 = arith.constant 0 : i32
    %c0_i32_0 = arith.constant 0 : i32
    %c0_i32_1 = arith.constant 0 : i32
    %c0_i32_2 = arith.constant 0 : i32
    return %arg0, %c0_i32, %c0_i32_0, %c0_i32_1 : i32, i32, i32, i32
  }
  func.func @transform_4(%arg0: i32, %arg1: i32) -> (i32, i32, i32) {
    %c0_i32 = arith.constant 0 : i32
    %c0_i32_0 = arith.constant 0 : i32
    %c0_i32_1 = arith.constant 0 : i32
    return %arg0, %c0_i32, %c0_i32_0 : i32, i32, i32
  }
  func.func @transform_5(%arg0: i32, %arg1: i32) -> (i32, i32, i32) {
    %c0_i32 = arith.constant 0 : i32
    %c0_i32_0 = arith.constant 0 : i32
    return %arg0, %arg1, %c0_i32 : i32, i32, i32
  }
}

</mosaic_0001>

<llo_original>
// kernel: tpu_custom_call.1
$region0: #{tpu_custom_call.1}
  #allocation0 [shape = 'u32[]', space=smem, size = 0x4, offset = 0x4, fixed_abs, tag = 'smem constant byte address 0x4 - core index']
  #allocation1 [shape = 'u32[144,128]{1,0:T(1,128)}', space=vmem, size = 0x12000, scoped, tag = 'internal scratch']
  #allocation2 [shape = 'f32[2,10,10,4]{3,2,1,0:T(8,128)}', space=vmem, size = 0x28000, scoped, tag = 'scratch operand']
  %s0 = inlined_call_operand.vmem [shape: f32[4,2,8,8,4], index: 0, kind: input, shape index: {}]
  %s1 = inlined_call_operand.vmem [shape: f32[4,1,4], index: 1, kind: input, shape index: {}]
  %s2 = inlined_call_operand.vmem [shape: f32[4,1,4], index: 2, kind: input, shape index: {}]
  %s3 = inlined_call_operand.vmem [shape: bf16[4,9,4,128], index: 3, kind: input, shape index: {}]
  %s4 = inlined_call_operand.vmem [shape: f32[4,1,8], index: 4, kind: input, shape index: {}]
  %s5 = inlined_call_operand.vmem [shape: f32[4,128,8], index: 5, kind: output, shape index: {}]
  %s6 = sld [smem:[#allocation0]]
  $region53: #{tpu_custom_call.1} parent=0
    _
  %s8 = ssub.s32 1, %s6
  %s9 = scalar_select 0, %s8, %s6
  loop: start=0, step=1, limit=6
  $region2: #{tpu_custom_call.1} parent=0 // loop_pre_header
    _
  $region3: #{tpu_custom_call.1} parent=0 // loop_header
    %s11 = sphi 0, %s15
    %p12 = scmp.ge.s32.totalorder %s11, 6
    %s18 = sphi 0, %s30
    %s19 = sphi 0, %s26
    %s20 = sphi 0, %s18
    %s21 = sphi 0, %s19
    %s22 = sphi 0, %s20
    %s23 = sphi 0, %s21
    %s35 = sphi 0, %s37
    %s38 = sphi 0, %s35
    %s39 = sphi 0, %s38
    %s55 = sphi 0, %s39
    %s61 = sphi 0, %s63
    %s64 = sphi 0, %s61
    %s65 = sphi 0, %s64
    %s81 = sphi 0, %s65
    %s87 = sphi 0, %s89
    %s90 = sphi 0, %s87
    %s91 = sphi 0, %s90
    %s107 = sphi 0, %s91
    %s113 = sphi 0, %s115
    %s116 = sphi 0, %s113
    %s117 = sphi 0, %s116
    %s133 = sphi 0, %s117
    %s139 = sphi 0, %s141
    %s142 = sphi 0, %s139
    %s143 = sphi 0, %s142
    %s159 = sphi 0, %s143
    %s167 = sphi 0, %s169
    %s170 = sphi 0, %s167
    %s171 = sphi 0, %s170
    %s187 = sphi 0, %s171
  $region4: #{tpu_custom_call.1} parent=0 // loop_header_branch
    %14 = sbr.rel (%p12) target = $region8
  $region5: #{tpu_custom_call.1} parent=0 // loop_body
    %s16 = ssub.s32 %s11, 1
    %s17 = ssub.s32 %s11, 2
    %s24 = sadd.s32 1, %s19
    %p25 = scmp.ge.s32.totalorder %s24, 1
    %s26 = scalar_select %p25, 0, %s24
    %s27 = sadd.s32 1, %s18
    %s28 = scalar_select %p25, %s27, %s18
    %p29 = scmp.ge.s32.totalorder %s28, 4
    %s30 = scalar_select %p29, 0, %s28
    %s31 = ssub.s32 %s18, %s30
    %s32 = ssub.s32 %s19, %s26
    %s33 = sor.u32 %s31, %s32
    %p34 = scmp.eq.s32.totalorder %s33, 0
    %s36 = sadd.s32 %s35, 1
    %s37 = scalar_select %p34, %s35, %s36
    %p40 = pneg %p34
    %p41 = scmp.eq.s32.totalorder %s11, 3
    %p42 = por %p40, %p41
    %p43 = scmp.ne.s32.totalorder %s35, %s38
    %p44 = scmp.eq.s32.totalorder %s11, 0
    %p45 = por %p43, %p44
    %p46 = scmp.ne.s32.totalorder %s35, %s38
    %p47 = scmp.eq.s32.totalorder %s16, 3
    %p48 = por %p46, %p47
    %p49 = scmp.ne.s32.totalorder %s38, %s39
    %p50 = scmp.eq.s32.totalorder %s16, 0
    %p51 = por %p49, %p50
    %p52 = scmp.ne.s32.totalorder %s38, %s39
    %p53 = scmp.eq.s32.totalorder %s17, 3
    %p54 = por %p52, %p53
    %p56 = scmp.ne.s32.totalorder %s39, %s55
    %p57 = scmp.eq.s32.totalorder %s17, 0
    %p58 = por %p56, %p57
    %s59 = ssub.s32 %s18, %s30
    %p60 = scmp.eq.s32.totalorder %s59, 0
    %s62 = sadd.s32 %s61, 1
    %s63 = scalar_select %p60, %s61, %s62
    %p66 = pneg %p60
    %p67 = scmp.eq.s32.totalorder %s11, 3
    %p68 = por %p66, %p67
    %p69 = scmp.ne.s32.totalorder %s61, %s64
    %p70 = scmp.eq.s32.totalorder %s11, 0
    %p71 = por %p69, %p70
    %p72 = scmp.ne.s32.totalorder %s61, %s64
    %p73 = scmp.eq.s32.totalorder %s16, 3
    %p74 = por %p72, %p73
    %p75 = scmp.ne.s32.totalorder %s64, %s65
    %p76 = scmp.eq.s32.totalorder %s16, 0
    %p77 = por %p75, %p76
    %p78 = scmp.ne.s32.totalorder %s64, %s65
    %p79 = scmp.eq.s32.totalorder %s17, 3
    %p80 = por %p78, %p79
    %p82 = scmp.ne.s32.totalorder %s65, %s81
    %p83 = scmp.eq.s32.totalorder %s17, 0
    %p84 = por %p82, %p83
    %s85 = ssub.s32 %s18, %s30
    %p86 = scmp.eq.s32.totalorder %s85, 0
    %s88 = sadd.s32 %s87, 1
    %s89 = scalar_select %p86, %s87, %s88
    %p92 = pneg %p86
    %p93 = scmp.eq.s32.totalorder %s11, 3
    %p94 = por %p92, %p93
    %p95 = scmp.ne.s32.totalorder %s87, %s90
    %p96 = scmp.eq.s32.totalorder %s11, 0
    %p97 = por %p95, %p96
    %p98 = scmp.ne.s32.totalorder %s87, %s90
    %p99 = scmp.eq.s32.totalorder %s16, 3
    %p100 = por %p98, %p99
    %p101 = scmp.ne.s32.totalorder %s90, %s91
    %p102 = scmp.eq.s32.totalorder %s16, 0
    %p103 = por %p101, %p102
    %p104 = scmp.ne.s32.totalorder %s90, %s91
    %p105 = scmp.eq.s32.totalorder %s17, 3
    %p106 = por %p104, %p105
    %p108 = scmp.ne.s32.totalorder %s91, %s107
    %p109 = scmp.eq.s32.totalorder %s17, 0
    %p110 = por %p108, %p109
    %s111 = ssub.s32 %s18, %s30
    %p112 = scmp.eq.s32.totalorder %s111, 0
    %s114 = sadd.s32 %s113, 1
    %s115 = scalar_select %p112, %s113, %s114
    %p118 = pneg %p112
    %p119 = scmp.eq.s32.totalorder %s11, 3
    %p120 = por %p118, %p119
    %p121 = scmp.ne.s32.totalorder %s113, %s116
    %p122 = scmp.eq.s32.totalorder %s11, 0
    %p123 = por %p121, %p122
    %p124 = scmp.ne.s32.totalorder %s113, %s116
    %p125 = scmp.eq.s32.totalorder %s16, 3
    %p126 = por %p124, %p125
    %p127 = scmp.ne.s32.totalorder %s116, %s117
    %p128 = scmp.eq.s32.totalorder %s16, 0
    %p129 = por %p127, %p128
    %p130 = scmp.ne.s32.totalorder %s116, %s117
    %p131 = scmp.eq.s32.totalorder %s17, 3
    %p132 = por %p130, %p131
    %p134 = scmp.ne.s32.totalorder %s117, %s133
    %p135 = scmp.eq.s32.totalorder %s17, 0
    %p136 = por %p134, %p135
    %s137 = ssub.s32 %s18, %s30
    %p138 = scmp.eq.s32.totalorder %s137, 0
    %s140 = sadd.s32 %s139, 1
    %s141 = scalar_select %p138, %s139, %s140
    %p144 = pneg %p138
    %p145 = scmp.eq.s32.totalorder %s11, 3
    %p146 = por %p144, %p145
    %p147 = scmp.ne.s32.totalorder %s139, %s142
    %p148 = scmp.eq.s32.totalorder %s11, 0
    %p149 = por %p147, %p148
    %p150 = scmp.ne.s32.totalorder %s139, %s142
    %p151 = scmp.eq.s32.totalorder %s16, 3
    %p152 = por %p150, %p151
    %p153 = scmp.ne.s32.totalorder %s142, %s143
    %p154 = scmp.eq.s32.totalorder %s16, 0
    %p155 = por %p153, %p154
    %p156 = scmp.ne.s32.totalorder %s142, %s143
    %p157 = scmp.eq.s32.totalorder %s17, 3
    %p158 = por %p156, %p157
    %p160 = scmp.ne.s32.totalorder %s143, %s159
    %p161 = scmp.eq.s32.totalorder %s17, 0
    %p162 = por %p160, %p161
    %s163 = ssub.s32 %s18, %s30
    %s164 = ssub.s32 %s19, %s26
    %s165 = sor.u32 %s163, %s164
    %p166 = scmp.eq.s32.totalorder %s165, 0
    %s168 = sadd.s32 %s167, 1
    %s169 = scalar_select %p166, %s167, %s168
    %p172 = pneg %p166
    %p173 = scmp.eq.s32.totalorder %s11, 3
    %p174 = por %p172, %p173
    %p175 = scmp.ne.s32.totalorder %s167, %s170
    %p176 = scmp.eq.s32.totalorder %s11, 0
    %p177 = por %p175, %p176
    %p178 = scmp.ne.s32.totalorder %s167, %s170
    %p179 = scmp.eq.s32.totalorder %s16, 3
    %p180 = por %p178, %p179
    %p181 = scmp.ne.s32.totalorder %s170, %s171
    %p182 = scmp.eq.s32.totalorder %s16, 0
    %p183 = por %p181, %p182
    %p184 = scmp.ne.s32.totalorder %s170, %s171
    %p185 = scmp.eq.s32.totalorder %s17, 3
    %p186 = por %p184, %p185
    %p188 = scmp.ne.s32.totalorder %s171, %s187
    %p189 = scmp.eq.s32.totalorder %s17, 0
    %p190 = por %p188, %p189
    %p191 = scmp.le.s32.totalorder 1, %s11
    %p192 = scmp.lt.s32.totalorder %s11, 5
    %p193 = pnand %p191, %p192
    %p194 = pneg %p193
    // Predicated region
    $region9: #{tpu_custom_call.1} parent=5 // pred_check
      _
    $region10: #{tpu_custom_call.1} parent=5 // pred_check_branch
      %196 = sbr.rel (%p193) target = $region12
    $region11: #{tpu_custom_call.1} parent=5 // pred_region
      %s197 = ssub.s32 %s11, 1
    $region12: #{tpu_custom_call.1} parent=5 // pred_fallthru
      _
    %p198 = scmp.lt.s32.totalorder %s11, 4
    // Predicated region
    $region13: #{tpu_custom_call.1} parent=5 // pred_check
      %p199 = pneg %p198
    $region14: #{tpu_custom_call.1} parent=5 // pred_check_branch
      %201 = sbr.rel (%p199) target = $region16
    $region15: #{tpu_custom_call.1} parent=5 // pred_region
      // Predicated region
      $region17: #{tpu_custom_call.1} parent=15 // pred_check
        %p202 = pneg %p45
      $region18: #{tpu_custom_call.1} parent=15 // pred_check_branch
        %204 = sbr.rel (%p202) target = $region20
      $region19: #{tpu_custom_call.1} parent=15 // pred_region
        %s205 = smul.u32 2, %s19
        %p206 = scmp.lt.s32.totalorder %s18, 3
        %s207 = scalar_select %p206, %s18, 3
        %p208 = scmp.lt.s32.totalorder %s205, 1
        %s209 = scalar_select %p208, %s205, 1
        %s210 = smul.addr %s209, 8
        %s211 = smul.addr %s207, 16
        %s212 = sadd.s32 %s210, %s211
        %s213 = smul.addr %s212, 8
        %s214 = scalar_lea.vmem %s0, %s213
        %s215 = smul.u32 2, %s19
      $region20: #{tpu_custom_call.1} parent=15 // pred_fallthru
        _
      // Predicated region
      $region21: #{tpu_custom_call.1} parent=15 // pred_check
        %p216 = pneg %p71
      $region22: #{tpu_custom_call.1} parent=15 // pred_check_branch
        %218 = sbr.rel (%p216) target = $region24
      $region23: #{tpu_custom_call.1} parent=15 // pred_region
        %p219 = scmp.lt.s32.totalorder %s18, 3
        %s220 = scalar_select %p219, %s18, 3
        %s221 = scalar_lea.vmem %s1, %s220
      $region24: #{tpu_custom_call.1} parent=15 // pred_fallthru
        _
      // Predicated region
      $region25: #{tpu_custom_call.1} parent=15 // pred_check
        %p222 = pneg %p97
      $region26: #{tpu_custom_call.1} parent=15 // pred_check_branch
        %224 = sbr.rel (%p222) target = $region28
      $region27: #{tpu_custom_call.1} parent=15 // pred_region
        %p225 = scmp.lt.s32.totalorder %s18, 3
        %s226 = scalar_select %p225, %s18, 3
        %s227 = scalar_lea.vmem %s2, %s226
      $region28: #{tpu_custom_call.1} parent=15 // pred_fallthru
        _
      // Predicated region
      $region29: #{tpu_custom_call.1} parent=15 // pred_check
        %p228 = pneg %p123
      $region30: #{tpu_custom_call.1} parent=15 // pred_check_branch
        %230 = sbr.rel (%p228) target = $region32
      $region31: #{tpu_custom_call.1} parent=15 // pred_region
        %p231 = scmp.lt.s32.totalorder %s18, 3
        %s232 = scalar_select %p231, %s18, 3
        %s233 = smul.addr %s232, 9
        %s234 = smul.addr %s233, 2
        %s235 = scalar_lea.vmem %s3, %s234
      $region32: #{tpu_custom_call.1} parent=15 // pred_fallthru
        _
      // Predicated region
      $region33: #{tpu_custom_call.1} parent=15 // pred_check
        %p236 = pneg %p149
      $region34: #{tpu_custom_call.1} parent=15 // pred_check_branch
        %238 = sbr.rel (%p236) target = $region36
      $region35: #{tpu_custom_call.1} parent=15 // pred_region
        %p239 = scmp.lt.s32.totalorder %s18, 3
        %s240 = scalar_select %p239, %s18, 3
        %s241 = scalar_lea.vmem %s4, %s240
      $region36: #{tpu_custom_call.1} parent=15 // pred_fallthru
        _
    $region16: #{tpu_custom_call.1} parent=5 // pred_fallthru
      _
    %p242 = scmp.le.s32.totalorder 1, %s11
    %p243 = scmp.lt.s32.totalorder %s11, 5
    %p244 = pnand %p242, %p243
    %p245 = pneg %p244
    // Predicated region
    $region37: #{tpu_custom_call.1} parent=5 // pred_check
      _
    $region38: #{tpu_custom_call.1} parent=5 // pred_check_branch
      %247 = sbr.rel (%p244) target = $region40
    $region39: #{tpu_custom_call.1} parent=5 // pred_region
      %s248 = ssub.s32 %s11, 1
      %s249 = smul.u32 2, %s21
      %p250 = scmp.lt.s32.totalorder %s20, 3
      %s251 = scalar_select %p250, %s20, 3
      %p252 = scmp.lt.s32.totalorder %s249, 1
      %s253 = scalar_select %p252, %s249, 1
      %s254 = smul.addr %s253, 8
      %s255 = smul.addr %s251, 16
      %s256 = sadd.s32 %s254, %s255
      %s257 = smul.addr %s256, 8
      %s258 = scalar_lea.vmem %s0, %s257
      %p259 = pneg %p51
      %p260 = pneg %p48
      %p261 = scmp.lt.s32.totalorder %s20, 3
      %s262 = scalar_select %p261, %s20, 3
      %s263 = scalar_lea.vmem %s1, %s262
      %p264 = pneg %p77
      %p265 = pneg %p74
      %p266 = scmp.lt.s32.totalorder %s20, 3
      %s267 = scalar_select %p266, %s20, 3
      %s268 = scalar_lea.vmem %s2, %s267
      %p269 = pneg %p103
      %p270 = pneg %p100
      %p271 = scmp.lt.s32.totalorder %s20, 3
      %s272 = scalar_select %p271, %s20, 3
      %s273 = smul.addr %s272, 9
      %s274 = smul.addr %s273, 2
      %s275 = scalar_lea.vmem %s3, %s274
      %p276 = pneg %p129
      %p277 = pneg %p126
      %p278 = scmp.lt.s32.totalorder %s20, 3
      %s279 = scalar_select %p278, %s20, 3
      %s280 = scalar_lea.vmem %s4, %s279
      %p281 = pneg %p155
      %p282 = pneg %p152
      %p283 = pneg %p183
      %p284 = pneg %p180
      %s285 = smul.u32 16, %s21
      %p286 = scmp.lt.s32.totalorder %s20, 3
      %s287 = scalar_select %p286, %s20, 3
      %p288 = scmp.lt.s32.totalorder %s285, 15
      %s289 = scalar_select %p288, %s285, 15
      %s290 = smul.addr %s287, 16
      %s291 = sadd.s32 %s289, %s290
      %s292 = smul.addr %s291, 8
      %s293 = scalar_lea.vmem %s5, %s292
      %s294 = smul.u32 2, %s21
      %p295 = scmp.lt.s32.totalorder %s20, 3
      %s296 = scalar_select %p295, %s20, 3
      %p297 = scmp.lt.s32.totalorder %s294, 1
      %s298 = scalar_select %p297, %s294, 1
      %s299 = smul.addr %s298, 8
      %s300 = smul.addr %s296, 16
      %s301 = sadd.s32 %s299, %s300
      %s302 = smul.addr %s301, 8
      %s303 = scalar_lea.vmem %s0, %s302
      %s304 = smul.u32 2, %s21
      %p305 = scmp.lt.s32.totalorder %s20, 3
      %s306 = scalar_select %p305, %s20, 3
      %s307 = scalar_lea.vmem %s1, %s306
      %p308 = scmp.lt.s32.totalorder %s20, 3
      %s309 = scalar_select %p308, %s20, 3
      %s310 = scalar_lea.vmem %s2, %s309
      %p311 = scmp.lt.s32.totalorder %s20, 3
      %s312 = scalar_select %p311, %s20, 3
      %s313 = smul.addr %s312, 9
      %s314 = smul.addr %s313, 2
      %s315 = scalar_lea.vmem %s3, %s314
      %p316 = scmp.lt.s32.totalorder %s20, 3
      %s317 = scalar_select %p316, %s20, 3
      %s318 = scalar_lea.vmem %s4, %s317
      %s319 = smul.u32 16, %s21
      %p320 = scmp.lt.s32.totalorder %s20, 3
      %s321 = scalar_select %p320, %s20, 3
      %p322 = scmp.lt.s32.totalorder %s319, 15
      %s323 = scalar_select %p322, %s319, 15
      %s324 = smul.addr %s321, 16
      %s325 = sadd.s32 %s323, %s324
      %s326 = smul.addr %s325, 8
      %s327 = scalar_lea.vmem %s5, %s326
      %s328 = smul.u32 16, %s21
      %v330 = vld [vmem:[%s303] sm:$0xff]
      %v331 = vld [vmem:[%s303 + $0x8] sm:$0xff]
      %v332 = vld [vmem:[%s303 + $0x10] sm:$0xff]
      %v333 = vld [vmem:[%s303 + $0x18] sm:$0xff]
      %v334 = vld [vmem:[%s303 + $0x20] sm:$0xff]
      %v335 = vld [vmem:[%s303 + $0x28] sm:$0xff]
      %v336 = vld [vmem:[%s303 + $0x30] sm:$0xff]
      %v337 = vld [vmem:[%s303 + $0x38] sm:$0xff]
      %v338 = vld [vmem:[%s303 + $0x40] sm:$0xff]
      %v339 = vld [vmem:[%s303 + $0x48] sm:$0xff]
      %v340 = vld [vmem:[%s303 + $0x50] sm:$0xff]
      %v341 = vld [vmem:[%s303 + $0x58] sm:$0xff]
      %v342 = vld [vmem:[%s303 + $0x60] sm:$0xff]
      %v343 = vld [vmem:[%s303 + $0x68] sm:$0xff]
      %v344 = vld [vmem:[%s303 + $0x70] sm:$0xff]
      %v345 = vld [vmem:[%s303 + $0x78] sm:$0xff]
      %v346 = vld [vmem:[%s307] sm:$0x1]
      %v348 = vlaneseq
      %v349 = vshrl.u32 %v348, 7
      %v350 = vsub.s32 0, %v349
      %v351 = vrot.slane %v346, %v350
      %v353 = vmul.f32 %v330, %v351
      %v354 = vmul.f32 %v331, %v351
      %v355 = vmul.f32 %v332, %v351
      %v356 = vmul.f32 %v333, %v351
      %v357 = vmul.f32 %v334, %v351
      %v358 = vmul.f32 %v335, %v351
      %v359 = vmul.f32 %v336, %v351
      %v360 = vmul.f32 %v337, %v351
      %v361 = vmul.f32 %v338, %v351
      %v362 = vmul.f32 %v339, %v351
      %v363 = vmul.f32 %v340, %v351
      %v364 = vmul.f32 %v341, %v351
      %v365 = vmul.f32 %v342, %v351
      %v366 = vmul.f32 %v343, %v351
      %v367 = vmul.f32 %v344, %v351
      %v368 = vmul.f32 %v345, %v351
      %v369 = vld [vmem:[%s310] sm:$0x1]
      %v371 = vlaneseq
      %v372 = vshrl.u32 %v371, 7
      %v373 = vsub.s32 0, %v372
      %v374 = vrot.slane %v369, %v373
      %v376 = vadd.f32 %v353, %v374
      %v377 = vadd.f32 %v354, %v374
      %v378 = vadd.f32 %v355, %v374
      %v379 = vadd.f32 %v356, %v374
      %v380 = vadd.f32 %v357, %v374
      %v381 = vadd.f32 %v358, %v374
      %v382 = vadd.f32 %v359, %v374
      %v383 = vadd.f32 %v360, %v374
      %v384 = vadd.f32 %v361, %v374
      %v385 = vadd.f32 %v362, %v374
      %v386 = vadd.f32 %v363, %v374
      %v387 = vadd.f32 %v364, %v374
      %v388 = vadd.f32 %v365, %v374
      %v389 = vadd.f32 %v366, %v374
      %v390 = vadd.f32 %v367, %v374
      %v391 = vadd.f32 %v368, %v374
      %v392 = vmax.f32 %v376, 0.0
      %v393 = vmax.f32 %v377, 0.0
      %v394 = vmax.f32 %v378, 0.0
      %v395 = vmax.f32 %v379, 0.0
      %v396 = vmax.f32 %v380, 0.0
      %v397 = vmax.f32 %v381, 0.0
      %v398 = vmax.f32 %v382, 0.0
      %v399 = vmax.f32 %v383, 0.0
      %v400 = vmax.f32 %v384, 0.0
      %v401 = vmax.f32 %v385, 0.0
      %v402 = vmax.f32 %v386, 0.0
      %v403 = vmax.f32 %v387, 0.0
      %v404 = vmax.f32 %v388, 0.0
      %v405 = vmax.f32 %v389, 0.0
      %v406 = vmax.f32 %v390, 0.0
      %v407 = vmax.f32 %v391, 0.0
      %vm408 = vcmask 31744
      %409 = vst.msk [vmem:[#allocation2] sm:$0xff] %vm408, 0.0
      %vm410 = vcmask 25600
      %411 = vst.msk [vmem:[#allocation2 + $0x8] sm:$0x3] %vm410, 0.0
      %412 = vst.msk [vmem:[#allocation2 + $0xa0] sm:$0xff] %vm408, 0.0
      %413 = vst.msk [vmem:[#allocation2 + $0xa8] sm:$0x3] %vm410, 0.0
      %s414 = scalar_lea.vmem [#allocation2], 144
      %415 = vst.msk [vmem:[%s414] sm:$0xff] %vm408, 0.0
      %416 = vst.msk [vmem:[%s414 + $0x8] sm:$0x3] %vm410, 0.0
      %417 = vst.msk [vmem:[%s414 + $0xa0] sm:$0xff] %vm408, 0.0
      %418 = vst.msk [vmem:[%s414 + $0xa8] sm:$0x3] %vm410, 0.0
      %vm419 = vcmask 24576
      %420 = vst.msk [vmem:[#allocation2] sm:$0x1] %vm419, 0.0
      %421 = vst.msk [vmem:[#allocation2 + $0x10] sm:$0x1] %vm419, 0.0
      %422 = vst.msk [vmem:[#allocation2 + $0x20] sm:$0x1] %vm419, 0.0
      %423 = vst.msk [vmem:[#allocation2 + $0x30] sm:$0x1] %vm419, 0.0
      %424 = vst.msk [vmem:[#allocation2 + $0x40] sm:$0x1] %vm419, 0.0
      %425 = vst.msk [vmem:[#allocation2 + $0x50] sm:$0x1] %vm419, 0.0
      %426 = vst.msk [vmem:[#allocation2 + $0x60] sm:$0x1] %vm419, 0.0
      %427 = vst.msk [vmem:[#allocation2 + $0x70] sm:$0x1] %vm419, 0.0
      %428 = vst.msk [vmem:[#allocation2 + $0x80] sm:$0x1] %vm419, 0.0
      %429 = vst.msk [vmem:[#allocation2 + $0x90] sm:$0x1] %vm419, 0.0
      %430 = vst.msk [vmem:[#allocation2 + $0xa0] sm:$0x1] %vm419, 0.0
      %431 = vst.msk [vmem:[#allocation2 + $0xb0] sm:$0x1] %vm419, 0.0
      %432 = vst.msk [vmem:[#allocation2 + $0xc0] sm:$0x1] %vm419, 0.0
      %433 = vst.msk [vmem:[#allocation2 + $0xd0] sm:$0x1] %vm419, 0.0
      %434 = vst.msk [vmem:[#allocation2 + $0xe0] sm:$0x1] %vm419, 0.0
      %435 = vst.msk [vmem:[#allocation2 + $0xf0] sm:$0x1] %vm419, 0.0
      %436 = vst.msk [vmem:[#allocation2 + $0x100] sm:$0x1] %vm419, 0.0
      %437 = vst.msk [vmem:[#allocation2 + $0x110] sm:$0x1] %vm419, 0.0
      %438 = vst.msk [vmem:[#allocation2 + $0x120] sm:$0x1] %vm419, 0.0
      %439 = vst.msk [vmem:[#allocation2 + $0x130] sm:$0x1] %vm419, 0.0
      %440 = vst.msk [vmem:[#allocation2 + $0x9] sm:$0x1] %vm419, 0.0
      %441 = vst.msk [vmem:[#allocation2 + $0x19] sm:$0x1] %vm419, 0.0
      %442 = vst.msk [vmem:[#allocation2 + $0x29] sm:$0x1] %vm419, 0.0
      %443 = vst.msk [vmem:[#allocation2 + $0x39] sm:$0x1] %vm419, 0.0
      %444 = vst.msk [vmem:[#allocation2 + $0x49] sm:$0x1] %vm419, 0.0
      %445 = vst.msk [vmem:[#allocation2 + $0x59] sm:$0x1] %vm419, 0.0
      %446 = vst.msk [vmem:[#allocation2 + $0x69] sm:$0x1] %vm419, 0.0
      %447 = vst.msk [vmem:[#allocation2 + $0x79] sm:$0x1] %vm419, 0.0
      %448 = vst.msk [vmem:[#allocation2 + $0x89] sm:$0x1] %vm419, 0.0
      %449 = vst.msk [vmem:[#allocation2 + $0x99] sm:$0x1] %vm419, 0.0
      %450 = vst.msk [vmem:[#allocation2 + $0xa9] sm:$0x1] %vm419, 0.0
      %451 = vst.msk [vmem:[#allocation2 + $0xb9] sm:$0x1] %vm419, 0.0
      %452 = vst.msk [vmem:[#allocation2 + $0xc9] sm:$0x1] %vm419, 0.0
      %453 = vst.msk [vmem:[#allocation2 + $0xd9] sm:$0x1] %vm419, 0.0
      %454 = vst.msk [vmem:[#allocation2 + $0xe9] sm:$0x1] %vm419, 0.0
      %455 = vst.msk [vmem:[#allocation2 + $0xf9] sm:$0x1] %vm419, 0.0
      %456 = vst.msk [vmem:[#allocation2 + $0x109] sm:$0x1] %vm419, 0.0
      %457 = vst.msk [vmem:[#allocation2 + $0x119] sm:$0x1] %vm419, 0.0
      %458 = vst.msk [vmem:[#allocation2 + $0x129] sm:$0x1] %vm419, 0.0
      %459 = vst.msk [vmem:[#allocation2 + $0x139] sm:$0x1] %vm419, 0.0
      %s460 = scalar_lea.vmem [#allocation2], 16
      %461 = vst.msk [vmem:[%s460 + $0x1] sm:$0xff] %vm408, %v392
      %462 = vst.msk [vmem:[%s460 + $0x11] sm:$0xff] %vm408, %v393
      %463 = vst.msk [vmem:[%s460 + $0x21] sm:$0xff] %vm408, %v394
      %464 = vst.msk [vmem:[%s460 + $0x31] sm:$0xff] %vm408, %v395
      %465 = vst.msk [vmem:[%s460 + $0x41] sm:$0xff] %vm408, %v396
      %466 = vst.msk [vmem:[%s460 + $0x51] sm:$0xff] %vm408, %v397
      %467 = vst.msk [vmem:[%s460 + $0x61] sm:$0xff] %vm408, %v398
      %468 = vst.msk [vmem:[%s460 + $0x71] sm:$0xff] %vm408, %v399
      %469 = vst.msk [vmem:[%s460 + $0xa1] sm:$0xff] %vm408, %v400
      %470 = vst.msk [vmem:[%s460 + $0xb1] sm:$0xff] %vm408, %v401
      %471 = vst.msk [vmem:[%s460 + $0xc1] sm:$0xff] %vm408, %v402
      %472 = vst.msk [vmem:[%s460 + $0xd1] sm:$0xff] %vm408, %v403
      %473 = vst.msk [vmem:[%s460 + $0xe1] sm:$0xff] %vm408, %v404
      %474 = vst.msk [vmem:[%s460 + $0xf1] sm:$0xff] %vm408, %v405
      %475 = vst.msk [vmem:[%s460 + $0x101] sm:$0xff] %vm408, %v406
      %476 = vst.msk [vmem:[%s460 + $0x111] sm:$0xff] %vm408, %v407
      %v477 = vld [vmem:[#allocation2] sm:$0xff]
      %v478 = vld [vmem:[#allocation2 + $0x10] sm:$0xff]
      %v479 = vld [vmem:[#allocation2 + $0x20] sm:$0xff]
      %v480 = vld [vmem:[#allocation2 + $0x30] sm:$0xff]
      %v481 = vld [vmem:[#allocation2 + $0x40] sm:$0xff]
      %v482 = vld [vmem:[#allocation2 + $0x50] sm:$0xff]
      %v483 = vld [vmem:[#allocation2 + $0x60] sm:$0xff]
      %v484 = vld [vmem:[#allocation2 + $0x70] sm:$0xff]
      %v485 = vld [vmem:[#allocation2 + $0xa0] sm:$0xff]
      %v486 = vld [vmem:[#allocation2 + $0xb0] sm:$0xff]
      %v487 = vld [vmem:[#allocation2 + $0xc0] sm:$0xff]
      %v488 = vld [vmem:[#allocation2 + $0xd0] sm:$0xff]
      %v489 = vld [vmem:[#allocation2 + $0xe0] sm:$0xff]
      %v490 = vld [vmem:[#allocation2 + $0xf0] sm:$0xff]
      %v491 = vld [vmem:[#allocation2 + $0x100] sm:$0xff]
      %v492 = vld [vmem:[#allocation2 + $0x110] sm:$0xff]
      %v493 = vpack.c.bf16 %v478, %v477
      %v494 = vpack.c.bf16 %v480, %v479
      %v495 = vpack.c.bf16 %v482, %v481
      %v496 = vpack.c.bf16 %v484, %v483
      %v497 = vpack.c.bf16 %v486, %v485
      %v498 = vpack.c.bf16 %v488, %v487
      %v499 = vpack.c.bf16 %v490, %v489
      %v500 = vpack.c.bf16 %v492, %v491
      %v501 = vld [vmem:[%s315] sm:$0x3]
      %v502 = vld [vmem:[#allocation2 + $0x1] sm:$0xff]
      %v503 = vld [vmem:[#allocation2 + $0x11] sm:$0xff]
      %v504 = vld [vmem:[#allocation2 + $0x21] sm:$0xff]
      %v505 = vld [vmem:[#allocation2 + $0x31] sm:$0xff]
      %v506 = vld [vmem:[#allocation2 + $0x41] sm:$0xff]
      %v507 = vld [vmem:[#allocation2 + $0x51] sm:$0xff]
      %v508 = vld [vmem:[#allocation2 + $0x61] sm:$0xff]
      %v509 = vld [vmem:[#allocation2 + $0x71] sm:$0xff]
      %v510 = vld [vmem:[#allocation2 + $0xa1] sm:$0xff]
      %v511 = vld [vmem:[#allocation2 + $0xb1] sm:$0xff]
      %v512 = vld [vmem:[#allocation2 + $0xc1] sm:$0xff]
      %v513 = vld [vmem:[#allocation2 + $0xd1] sm:$0xff]
      %v514 = vld [vmem:[#allocation2 + $0xe1] sm:$0xff]
      %v515 = vld [vmem:[#allocation2 + $0xf1] sm:$0xff]
      %v516 = vld [vmem:[#allocation2 + $0x101] sm:$0xff]
      %v517 = vld [vmem:[#allocation2 + $0x111] sm:$0xff]
      %v518 = vpack.c.bf16 %v503, %v502
      %v519 = vpack.c.bf16 %v505, %v504
      %v520 = vpack.c.bf16 %v507, %v506
      %v521 = vpack.c.bf16 %v509, %v508
      %v522 = vpack.c.bf16 %v511, %v510
      %v523 = vpack.c.bf16 %v513, %v512
      %v524 = vpack.c.bf16 %v515, %v514
      %v525 = vpack.c.bf16 %v517, %v516
      %s526 = scalar_lea.vmem %s315, 2
      %v527 = vld [vmem:[%s526] sm:$0x3]
      %v529 = vsel %vm408, %v518, 0
      %v532 = vsel %vm408, %v519, 0
      %v535 = vsel %vm408, %v520, 0
      %v538 = vsel %vm408, %v521, 0
      %v541 = vsel %vm408, %v522, 0
      %v544 = vsel %vm408, %v523, 0
      %v547 = vsel %vm408, %v524, 0
      %v550 = vsel %vm408, %v525, 0
      %vm552 = vcmask 1041408
      %v554 = vsel %vm552, %v527, 0
      %556 = vmatprep.subr.bf16.mxu0 0
      %557 = vmatpush1.bf16.msra.mxu0 0
      %558 = vmatprep.subr.bf16.mxu0 0
      %559 = vmatpush1.bf16.msra.mxu0 0
      %560 = vmatprep.subr.bf16.mxu0 0
      %561 = vmatpush1.bf16.msra.mxu0 0
      %562 = vmatprep.subr.bf16.mxu0 0
      %563 = vmatpush1.bf16.msra.mxu0 0
      %564 = vmatprep.subr.bf16.mxu0 0
      %565 = vmatpush1.bf16.msra.mxu0 0
      %566 = vmatprep.subr.bf16.mxu0 0
      %567 = vmatpush1.bf16.msra.mxu0 0
      %568 = vmatprep.subr.bf16.mxu0 0
      %569 = vmatpush1.bf16.msra.mxu0 0
      %570 = vmatprep.subr.bf16.mxu0 0
      %571 = vmatpush1.bf16.msra.mxu0 %v554
      %572 = vmatprep.subr.bf16.mxu0 0
      %573 = vmatpush2.bf16.msra.mxu0 0
      %574 = vmatprep.subr.bf16.mxu0 0
      %575 = vmatpush2.bf16.msra.mxu0 0
      %576 = vmatprep.subr.bf16.mxu0 0
      %577 = vmatpush2.bf16.msra.mxu0 0
      %578 = vmatprep.subr.bf16.mxu0 0
      %579 = vmatpush2.bf16.msra.mxu0 0
      %580 = vmatprep.subr.bf16.mxu0 0
      %581 = vmatpush2.bf16.msra.mxu0 0
      %582 = vmatprep.subr.bf16.mxu0 0
      %583 = vmatpush2.bf16.msra.mxu0 0
      %584 = vmatprep.subr.bf16.mxu0 0
      %585 = vmatpush2.bf16.msra.mxu0 0
      %586 = vmatprep.subr.bf16.mxu0 0
      %587 = vmatpush2.bf16.msra.mxu0 0
      %588 = vmatprep.mubr.bf16.mxu0 0
      %589 = vmatmul.mubr.bf16.gmra.mxu0 %v529
      %v590 = vpop.f32.mrf.mxu0
      %v591 = vadd.f32 0.0, %v590
      %v592 = vpop.f32.mrf.mxu0
      %v593 = vpop.f32.mrf.mxu0
      %v594 = vadd.f32 0.0, %v593
      %v595 = vpop.f32.mrf.mxu0
      %596 = vmatprep.mubr.bf16.mxu0 0
      %597 = vmatmul.mubr.bf16.gmra.mxu0 %v532
      %v598 = vpop.f32.mrf.mxu0
      %v599 = vadd.f32 0.0, %v598
      %v600 = vpop.f32.mrf.mxu0
      %v601 = vpop.f32.mrf.mxu0
      %v602 = vadd.f32 0.0, %v601
      %v603 = vpop.f32.mrf.mxu0
      %604 = vmatprep.mubr.bf16.mxu0 0
      %605 = vmatmul.mubr.bf16.gmra.mxu0 %v535
      %v606 = vpop.f32.mrf.mxu0
      %v607 = vadd.f32 0.0, %v606
      %v608 = vpop.f32.mrf.mxu0
      %v609 = vpop.f32.mrf.mxu0
      %v610 = vadd.f32 0.0, %v609
      %v611 = vpop.f32.mrf.mxu0
      %612 = vmatprep.mubr.bf16.mxu0 0
      %613 = vmatmul.mubr.bf16.gmra.mxu0 %v538
      %v614 = vpop.f32.mrf.mxu0
      %v615 = vadd.f32 0.0, %v614
      %v616 = vpop.f32.mrf.mxu0
      %v617 = vpop.f32.mrf.mxu0
      %v618 = vadd.f32 0.0, %v617
      %v619 = vpop.f32.mrf.mxu0
      %620 = vmatprep.mubr.bf16.mxu0 0
      %621 = vmatmul.mubr.bf16.gmra.mxu0 %v541
      %v622 = vpop.f32.mrf.mxu0
      %v623 = vadd.f32 0.0, %v622
      %v624 = vpop.f32.mrf.mxu0
      %v625 = vpop.f32.mrf.mxu0
      %v626 = vadd.f32 0.0, %v625
      %v627 = vpop.f32.mrf.mxu0
      %628 = vmatprep.mubr.bf16.mxu0 0
      %629 = vmatmul.mubr.bf16.gmra.mxu0 %v544
      %v630 = vpop.f32.mrf.mxu0
      %v631 = vadd.f32 0.0, %v630
      %v632 = vpop.f32.mrf.mxu0
      %v633 = vpop.f32.mrf.mxu0
      %v634 = vadd.f32 0.0, %v633
      %v635 = vpop.f32.mrf.mxu0
      %636 = vmatprep.mubr.bf16.mxu0 0
      %637 = vmatmul.mubr.bf16.gmra.mxu0 %v547
      %v638 = vpop.f32.mrf.mxu0
      %v639 = vadd.f32 0.0, %v638
      %v640 = vpop.f32.mrf.mxu0
      %v641 = vpop.f32.mrf.mxu0
      %v642 = vadd.f32 0.0, %v641
      %v643 = vpop.f32.mrf.mxu0
      %644 = vmatprep.mubr.bf16.mxu0 0
      %645 = vmatmul.mubr.bf16.gmra.mxu0 %v550
      %v646 = vpop.f32.mrf.mxu0
      %v647 = vadd.f32 0.0, %v646
      %v648 = vpop.f32.mrf.mxu0
      %v649 = vpop.f32.mrf.mxu0
      %v650 = vadd.f32 0.0, %v649
      %v651 = vpop.f32.mrf.mxu0
      %652 = vdwg.mxu0
      %v654 = vsel %vm408, %v493, 0
      %v657 = vsel %vm408, %v494, 0
      %v660 = vsel %vm408, %v495, 0
      %v663 = vsel %vm408, %v496, 0
      %v666 = vsel %vm408, %v497, 0
      %v669 = vsel %vm408, %v498, 0
      %v672 = vsel %vm408, %v499, 0
      %v675 = vsel %vm408, %v500, 0
      %v678 = vsel %vm552, %v501, 0
      %680 = vmatprep.subr.bf16.mxu0 0
      %681 = vmatpush1.bf16.msra.mxu0 0
      %682 = vmatprep.subr.bf16.mxu0 0
      %683 = vmatpush1.bf16.msra.mxu0 0
      %684 = vmatprep.subr.bf16.mxu0 0
      %685 = vmatpush1.bf16.msra.mxu0 0
      %686 = vmatprep.subr.bf16.mxu0 0
      %687 = vmatpush1.bf16.msra.mxu0 0
      %688 = vmatprep.subr.bf16.mxu0 0
      %689 = vmatpush1.bf16.msra.mxu0 0
      %690 = vmatprep.subr.bf16.mxu0 0
      %691 = vmatpush1.bf16.msra.mxu0 0
      %692 = vmatprep.subr.bf16.mxu0 0
      %693 = vmatpush1.bf16.msra.mxu0 0
      %694 = vmatprep.subr.bf16.mxu0 0
      %695 = vmatpush1.bf16.msra.mxu0 %v678
      %696 = vmatprep.subr.bf16.mxu0 0
      %697 = vmatpush2.bf16.msra.mxu0 0
      %698 = vmatprep.subr.bf16.mxu0 0
      %699 = vmatpush2.bf16.msra.mxu0 0
      %700 = vmatprep.subr.bf16.mxu0 0
      %701 = vmatpush2.bf16.msra.mxu0 0
      %702 = vmatprep.subr.bf16.mxu0 0
      %703 = vmatpush2.bf16.msra.mxu0 0
      %704 = vmatprep.subr.bf16.mxu0 0
      %705 = vmatpush2.bf16.msra.mxu0 0
      %706 = vmatprep.subr.bf16.mxu0 0
      %707 = vmatpush2.bf16.msra.mxu0 0
      %708 = vmatprep.subr.bf16.mxu0 0
      %709 = vmatpush2.bf16.msra.mxu0 0
      %710 = vmatprep.subr.bf16.mxu0 0
      %711 = vmatpush2.bf16.msra.mxu0 0
      %712 = vmatprep.mubr.bf16.mxu0 0
      %713 = vmatmul.mubr.bf16.gmra.mxu0 %v654
      %v714 = vpop.f32.mrf.mxu0
      %v715 = vadd.f32 %v591, %v714
      %v716 = vpop.f32.mrf.mxu0
      %v717 = vpop.f32.mrf.mxu0
      %v718 = vadd.f32 %v594, %v717
      %v719 = vpop.f32.mrf.mxu0
      %720 = vmatprep.mubr.bf16.mxu0 0
      %721 = vmatmul.mubr.bf16.gmra.mxu0 %v657
      %v722 = vpop.f32.mrf.mxu0
      %v723 = vadd.f32 %v599, %v722
      %v724 = vpop.f32.mrf.mxu0
      %v725 = vpop.f32.mrf.mxu0
      %v726 = vadd.f32 %v602, %v725
      %v727 = vpop.f32.mrf.mxu0
      %728 = vmatprep.mubr.bf16.mxu0 0
      %729 = vmatmul.mubr.bf16.gmra.mxu0 %v660
      %v730 = vpop.f32.mrf.mxu0
      %v731 = vadd.f32 %v607, %v730
      %v732 = vpop.f32.mrf.mxu0
      %v733 = vpop.f32.mrf.mxu0
      %v734 = vadd.f32 %v610, %v733
      %v735 = vpop.f32.mrf.mxu0
      %736 = vmatprep.mubr.bf16.mxu0 0
      %737 = vmatmul.mubr.bf16.gmra.mxu0 %v663
      %v738 = vpop.f32.mrf.mxu0
      %v739 = vadd.f32 %v615, %v738
      %v740 = vpop.f32.mrf.mxu0
      %v741 = vpop.f32.mrf.mxu0
      %v742 = vadd.f32 %v618, %v741
      %v743 = vpop.f32.mrf.mxu0
      %744 = vmatprep.mubr.bf16.mxu0 0
      %745 = vmatmul.mubr.bf16.gmra.mxu0 %v666
      %v746 = vpop.f32.mrf.mxu0
      %v747 = vadd.f32 %v623, %v746
      %v748 = vpop.f32.mrf.mxu0
      %v749 = vpop.f32.mrf.mxu0
      %v750 = vadd.f32 %v626, %v749
      %v751 = vpop.f32.mrf.mxu0
      %752 = vmatprep.mubr.bf16.mxu0 0
      %753 = vmatmul.mubr.bf16.gmra.mxu0 %v669
      %v754 = vpop.f32.mrf.mxu0
      %v755 = vadd.f32 %v631, %v754
      %v756 = vpop.f32.mrf.mxu0
      %v757 = vpop.f32.mrf.mxu0
      %v758 = vadd.f32 %v634, %v757
      %v759 = vpop.f32.mrf.mxu0
      %760 = vmatprep.mubr.bf16.mxu0 0
      %761 = vmatmul.mubr.bf16.gmra.mxu0 %v672
      %v762 = vpop.f32.mrf.mxu0
      %v763 = vadd.f32 %v639, %v762
      %v764 = vpop.f32.mrf.mxu0
      %v765 = vpop.f32.mrf.mxu0
      %v766 = vadd.f32 %v642, %v765
      %v767 = vpop.f32.mrf.mxu0
      %768 = vmatprep.mubr.bf16.mxu0 0
      %769 = vmatmul.mubr.bf16.gmra.mxu0 %v675
      %v770 = vpop.f32.mrf.mxu0
      %v771 = vadd.f32 %v647, %v770
      %v772 = vpop.f32.mrf.mxu0
      %v773 = vpop.f32.mrf.mxu0
      %v774 = vadd.f32 %v650, %v773
      %v775 = vpop.f32.mrf.mxu0
      %776 = vdwg.mxu0
      %v777 = vld [vmem:[#allocation2 + $0x2] sm:$0xff]
      %v778 = vld [vmem:[#allocation2 + $0x12] sm:$0xff]
      %v779 = vld [vmem:[#allocation2 + $0x22] sm:$0xff]
      %v780 = vld [vmem:[#allocation2 + $0x32] sm:$0xff]
      %v781 = vld [vmem:[#allocation2 + $0x42] sm:$0xff]
      %v782 = vld [vmem:[#allocation2 + $0x52] sm:$0xff]
      %v783 = vld [vmem:[#allocation2 + $0x62] sm:$0xff]
      %v784 = vld [vmem:[#allocation2 + $0x72] sm:$0xff]
      %v785 = vld [vmem:[#allocation2 + $0xa2] sm:$0xff]
      %v786 = vld [vmem:[#allocation2 + $0xb2] sm:$0xff]
      %v787 = vld [vmem:[#allocation2 + $0xc2] sm:$0xff]
      %v788 = vld [vmem:[#allocation2 + $0xd2] sm:$0xff]
      %v789 = vld [vmem:[#allocation2 + $0xe2] sm:$0xff]
      %v790 = vld [vmem:[#allocation2 + $0xf2] sm:$0xff]
      %v791 = vld [vmem:[#allocation2 + $0x102] sm:$0xff]
      %v792 = vld [vmem:[#allocation2 + $0x112] sm:$0xff]
      %v793 = vpack.c.bf16 %v778, %v777
      %v794 = vpack.c.bf16 %v780, %v779
      %v795 = vpack.c.bf16 %v782, %v781
      %v796 = vpack.c.bf16 %v784, %v783
      %v797 = vpack.c.bf16 %v786, %v785
      %v798 = vpack.c.bf16 %v788, %v787
      %v799 = vpack.c.bf16 %v790, %v789
      %v800 = vpack.c.bf16 %v792, %v791
      %s801 = scalar_lea.vmem %s315, 4
      %v802 = vld [vmem:[%s801] sm:$0x3]
      %v804 = vsel %vm408, %v793, 0
      %v807 = vsel %vm408, %v794, 0
      %v810 = vsel %vm408, %v795, 0
      %v813 = vsel %vm408, %v796, 0
      %v816 = vsel %vm408, %v797, 0
      %v819 = vsel %vm408, %v798, 0
      %v822 = vsel %vm408, %v799, 0
      %v825 = vsel %vm408, %v800, 0
      %v828 = vsel %vm552, %v802, 0
      %830 = vmatprep.subr.bf16.mxu0 0
      %831 = vmatpush1.bf16.msra.mxu0 0
      %832 = vmatprep.subr.bf16.mxu0 0
      %833 = vmatpush1.bf16.msra.mxu0 0
      %834 = vmatprep.subr.bf16.mxu0 0
      %835 = vmatpush1.bf16.msra.mxu0 0
      %836 = vmatprep.subr.bf16.mxu0 0
      %837 = vmatpush1.bf16.msra.mxu0 0
      %838 = vmatprep.subr.bf16.mxu0 0
      %839 = vmatpush1.bf16.msra.mxu0 0
      %840 = vmatprep.subr.bf16.mxu0 0
      %841 = vmatpush1.bf16.msra.mxu0 0
      %842 = vmatprep.subr.bf16.mxu0 0
      %843 = vmatpush1.bf16.msra.mxu0 0
      %844 = vmatprep.subr.bf16.mxu0 0
      %845 = vmatpush1.bf16.msra.mxu0 %v828
      %846 = vmatprep.subr.bf16.mxu0 0
      %847 = vmatpush2.bf16.msra.mxu0 0
      %848 = vmatprep.subr.bf16.mxu0 0
      %849 = vmatpush2.bf16.msra.mxu0 0
      %850 = vmatprep.subr.bf16.mxu0 0
      %851 = vmatpush2.bf16.msra.mxu0 0
      %852 = vmatprep.subr.bf16.mxu0 0
      %853 = vmatpush2.bf16.msra.mxu0 0
      %854 = vmatprep.subr.bf16.mxu0 0
      %855 = vmatpush2.bf16.msra.mxu0 0
      %856 = vmatprep.subr.bf16.mxu0 0
      %857 = vmatpush2.bf16.msra.mxu0 0
      %858 = vmatprep.subr.bf16.mxu0 0
      %859 = vmatpush2.bf16.msra.mxu0 0
      %860 = vmatprep.subr.bf16.mxu0 0
      %861 = vmatpush2.bf16.msra.mxu0 0
      %862 = vmatprep.mubr.bf16.mxu0 0
      %863 = vmatmul.mubr.bf16.gmra.mxu0 %v804
      %v864 = vpop.f32.mrf.mxu0
      %v865 = vadd.f32 0.0, %v864
      %v866 = vpop.f32.mrf.mxu0
      %v867 = vpop.f32.mrf.mxu0
      %v868 = vadd.f32 0.0, %v867
      %v869 = vpop.f32.mrf.mxu0
      %870 = vmatprep.mubr.bf16.mxu0 0
      %871 = vmatmul.mubr.bf16.gmra.mxu0 %v807
      %v872 = vpop.f32.mrf.mxu0
      %v873 = vadd.f32 0.0, %v872
      %v874 = vpop.f32.mrf.mxu0
      %v875 = vpop.f32.mrf.mxu0
      %v876 = vadd.f32 0.0, %v875
      %v877 = vpop.f32.mrf.mxu0
      %878 = vmatprep.mubr.bf16.mxu0 0
      %879 = vmatmul.mubr.bf16.gmra.mxu0 %v810
      %v880 = vpop.f32.mrf.mxu0
      %v881 = vadd.f32 0.0, %v880
      %v882 = vpop.f32.mrf.mxu0
      %v883 = vpop.f32.mrf.mxu0
      %v884 = vadd.f32 0.0, %v883
      %v885 = vpop.f32.mrf.mxu0
      %886 = vmatprep.mubr.bf16.mxu0 0
      %887 = vmatmul.mubr.bf16.gmra.mxu0 %v813
      %v888 = vpop.f32.mrf.mxu0
      %v889 = vadd.f32 0.0, %v888
      %v890 = vpop.f32.mrf.mxu0
      %v891 = vpop.f32.mrf.mxu0
      %v892 = vadd.f32 0.0, %v891
      %v893 = vpop.f32.mrf.mxu0
      %894 = vmatprep.mubr.bf16.mxu0 0
      %895 = vmatmul.mubr.bf16.gmra.mxu0 %v816
      %v896 = vpop.f32.mrf.mxu0
      %v897 = vadd.f32 0.0, %v896
      %v898 = vpop.f32.mrf.mxu0
      %v899 = vpop.f32.mrf.mxu0
      %v900 = vadd.f32 0.0, %v899
      %v901 = vpop.f32.mrf.mxu0
      %902 = vmatprep.mubr.bf16.mxu0 0
      %903 = vmatmul.mubr.bf16.gmra.mxu0 %v819
      %v904 = vpop.f32.mrf.mxu0
      %v905 = vadd.f32 0.0, %v904
      %v906 = vpop.f32.mrf.mxu0
      %v907 = vpop.f32.mrf.mxu0
      %v908 = vadd.f32 0.0, %v907
      %v909 = vpop.f32.mrf.mxu0
      %910 = vmatprep.mubr.bf16.mxu0 0
      %911 = vmatmul.mubr.bf16.gmra.mxu0 %v822
      %v912 = vpop.f32.mrf.mxu0
      %v913 = vadd.f32 0.0, %v912
      %v914 = vpop.f32.mrf.mxu0
      %v915 = vpop.f32.mrf.mxu0
      %v916 = vadd.f32 0.0, %v915
      %v917 = vpop.f32.mrf.mxu0
      %918 = vmatprep.mubr.bf16.mxu0 0
      %919 = vmatmul.mubr.bf16.gmra.mxu0 %v825
      %v920 = vpop.f32.mrf.mxu0
      %v921 = vadd.f32 0.0, %v920
      %v922 = vpop.f32.mrf.mxu0
      %v923 = vpop.f32.mrf.mxu0
      %v924 = vadd.f32 0.0, %v923
      %v925 = vpop.f32.mrf.mxu0
      %926 = vdwg.mxu0
      %v927 = vadd.f32 %v715, %v865
      %v928 = vadd.f32 %v718, %v868
      %v929 = vadd.f32 %v723, %v873
      %v930 = vadd.f32 %v726, %v876
      %v931 = vadd.f32 %v731, %v881
      %v932 = vadd.f32 %v734, %v884
      %v933 = vadd.f32 %v739, %v889
      %v934 = vadd.f32 %v742, %v892
      %v935 = vadd.f32 %v747, %v897
      %v936 = vadd.f32 %v750, %v900
      %v937 = vadd.f32 %v755, %v905
      %v938 = vadd.f32 %v758, %v908
      %v939 = vadd.f32 %v763, %v913
      %v940 = vadd.f32 %v766, %v916
      %v941 = vadd.f32 %v771, %v921
      %v942 = vadd.f32 %v774, %v924
      %v943 = vld [vmem:[%s460] sm:$0xff]
      %v944 = vld [vmem:[%s460 + $0x10] sm:$0xff]
      %v945 = vld [vmem:[%s460 + $0x20] sm:$0xff]
      %v946 = vld [vmem:[%s460 + $0x30] sm:$0xff]
      %v947 = vld [vmem:[%s460 + $0x40] sm:$0xff]
      %v948 = vld [vmem:[%s460 + $0x50] sm:$0xff]
      %v949 = vld [vmem:[%s460 + $0x60] sm:$0xff]
      %v950 = vld [vmem:[%s460 + $0x70] sm:$0xff]
      %v951 = vld [vmem:[%s460 + $0xa0] sm:$0xff]
      %v952 = vld [vmem:[%s460 + $0xb0] sm:$0xff]
      %v953 = vld [vmem:[%s460 + $0xc0] sm:$0xff]
      %v954 = vld [vmem:[%s460 + $0xd0] sm:$0xff]
      %v955 = vld [vmem:[%s460 + $0xe0] sm:$0xff]
      %v956 = vld [vmem:[%s460 + $0xf0] sm:$0xff]
      %v957 = vld [vmem:[%s460 + $0x100] sm:$0xff]
      %v958 = vld [vmem:[%s460 + $0x110] sm:$0xff]
      %v959 = vpack.c.bf16 %v944, %v943
      %v960 = vpack.c.bf16 %v946, %v945
      %v961 = vpack.c.bf16 %v948, %v947
      %v962 = vpack.c.bf16 %v950, %v949
      %v963 = vpack.c.bf16 %v952, %v951
      %v964 = vpack.c.bf16 %v954, %v953
      %v965 = vpack.c.bf16 %v956, %v955
      %v966 = vpack.c.bf16 %v958, %v957
      %s967 = scalar_lea.vmem %s315, 6
      %v968 = vld [vmem:[%s967] sm:$0x3]
      %v970 = vsel %vm408, %v959, 0
      %v973 = vsel %vm408, %v960, 0
      %v976 = vsel %vm408, %v961, 0
      %v979 = vsel %vm408, %v962, 0
      %v982 = vsel %vm408, %v963, 0
      %v985 = vsel %vm408, %v964, 0
      %v988 = vsel %vm408, %v965, 0
      %v991 = vsel %vm408, %v966, 0
      %v994 = vsel %vm552, %v968, 0
      %996 = vmatprep.subr.bf16.mxu0 0
      %997 = vmatpush1.bf16.msra.mxu0 0
      %998 = vmatprep.subr.bf16.mxu0 0
      %999 = vmatpush1.bf16.msra.mxu0 0
      %1000 = vmatprep.subr.bf16.mxu0 0
      %1001 = vmatpush1.bf16.msra.mxu0 0
      %1002 = vmatprep.subr.bf16.mxu0 0
      %1003 = vmatpush1.bf16.msra.mxu0 0
      %1004 = vmatprep.subr.bf16.mxu0 0
      %1005 = vmatpush1.bf16.msra.mxu0 0
      %1006 = vmatprep.subr.bf16.mxu0 0
      %1007 = vmatpush1.bf16.msra.mxu0 0
      %1008 = vmatprep.subr.bf16.mxu0 0
      %1009 = vmatpush1.bf16.msra.mxu0 0
      %1010 = vmatprep.subr.bf16.mxu0 0
      %1011 = vmatpush1.bf16.msra.mxu0 %v994
      %1012 = vmatprep.subr.bf16.mxu0 0
      %1013 = vmatpush2.bf16.msra.mxu0 0
      %1014 = vmatprep.subr.bf16.mxu0 0
      %1015 = vmatpush2.bf16.msra.mxu0 0
      %1016 = vmatprep.subr.bf16.mxu0 0
      %1017 = vmatpush2.bf16.msra.mxu0 0
      %1018 = vmatprep.subr.bf16.mxu0 0
      %1019 = vmatpush2.bf16.msra.mxu0 0
      %1020 = vmatprep.subr.bf16.mxu0 0
      %1021 = vmatpush2.bf16.msra.mxu0 0
      %1022 = vmatprep.subr.bf16.mxu0 0
      %1023 = vmatpush2.bf16.msra.mxu0 0
      %1024 = vmatprep.subr.bf16.mxu0 0
      %1025 = vmatpush2.bf16.msra.mxu0 0
      %1026 = vmatprep.subr.bf16.mxu0 0
      %1027 = vmatpush2.bf16.msra.mxu0 0
      %1028 = vmatprep.mubr.bf16.mxu0 0
      %1029 = vmatmul.mubr.bf16.gmra.mxu0 %v970
      %v1030 = vpop.f32.mrf.mxu0
      %v1031 = vadd.f32 0.0, %v1030
      %v1032 = vpop.f32.mrf.mxu0
      %v1033 = vpop.f32.mrf.mxu0
      %v1034 = vadd.f32 0.0, %v1033
      %v1035 = vpop.f32.mrf.mxu0
      %1036 = vmatprep.mubr.bf16.mxu0 0
      %1037 = vmatmul.mubr.bf16.gmra.mxu0 %v973
      %v1038 = vpop.f32.mrf.mxu0
      %v1039 = vadd.f32 0.0, %v1038
      %v1040 = vpop.f32.mrf.mxu0
      %v1041 = vpop.f32.mrf.mxu0
      %v1042 = vadd.f32 0.0, %v1041
      %v1043 = vpop.f32.mrf.mxu0
      %1044 = vmatprep.mubr.bf16.mxu0 0
      %1045 = vmatmul.mubr.bf16.gmra.mxu0 %v976
      %v1046 = vpop.f32.mrf.mxu0
      %v1047 = vadd.f32 0.0, %v1046
      %v1048 = vpop.f32.mrf.mxu0
      %v1049 = vpop.f32.mrf.mxu0
      %v1050 = vadd.f32 0.0, %v1049
      %v1051 = vpop.f32.mrf.mxu0
      %1052 = vmatprep.mubr.bf16.mxu0 0
      %1053 = vmatmul.mubr.bf16.gmra.mxu0 %v979
      %v1054 = vpop.f32.mrf.mxu0
      %v1055 = vadd.f32 0.0, %v1054
      %v1056 = vpop.f32.mrf.mxu0
      %v1057 = vpop.f32.mrf.mxu0
      %v1058 = vadd.f32 0.0, %v1057
      %v1059 = vpop.f32.mrf.mxu0
      %1060 = vmatprep.mubr.bf16.mxu0 0
      %1061 = vmatmul.mubr.bf16.gmra.mxu0 %v982
      %v1062 = vpop.f32.mrf.mxu0
      %v1063 = vadd.f32 0.0, %v1062
      %v1064 = vpop.f32.mrf.mxu0
      %v1065 = vpop.f32.mrf.mxu0
      %v1066 = vadd.f32 0.0, %v1065
      %v1067 = vpop.f32.mrf.mxu0
      %1068 = vmatprep.mubr.bf16.mxu0 0
      %1069 = vmatmul.mubr.bf16.gmra.mxu0 %v985
      %v1070 = vpop.f32.mrf.mxu0
      %v1071 = vadd.f32 0.0, %v1070
      %v1072 = vpop.f32.mrf.mxu0
      %v1073 = vpop.f32.mrf.mxu0
      %v1074 = vadd.f32 0.0, %v1073
      %v1075 = vpop.f32.mrf.mxu0
      %1076 = vmatprep.mubr.bf16.mxu0 0
      %1077 = vmatmul.mubr.bf16.gmra.mxu0 %v988
      %v1078 = vpop.f32.mrf.mxu0
      %v1079 = vadd.f32 0.0, %v1078
      %v1080 = vpop.f32.mrf.mxu0
      %v1081 = vpop.f32.mrf.mxu0
      %v1082 = vadd.f32 0.0, %v1081
      %v1083 = vpop.f32.mrf.mxu0
      %1084 = vmatprep.mubr.bf16.mxu0 0
      %1085 = vmatmul.mubr.bf16.gmra.mxu0 %v991
      %v1086 = vpop.f32.mrf.mxu0
      %v1087 = vadd.f32 0.0, %v1086
      %v1088 = vpop.f32.mrf.mxu0
      %v1089 = vpop.f32.mrf.mxu0
      %v1090 = vadd.f32 0.0, %v1089
      %v1091 = vpop.f32.mrf.mxu0
      %1092 = vdwg.mxu0
      %v1093 = vadd.f32 %v927, %v1031
      %v1094 = vadd.f32 %v928, %v1034
      %v1095 = vadd.f32 %v929, %v1039
      %v1096 = vadd.f32 %v930, %v1042
      %v1097 = vadd.f32 %v931, %v1047
      %v1098 = vadd.f32 %v932, %v1050
      %v1099 = vadd.f32 %v933, %v1055
      %v1100 = vadd.f32 %v934, %v1058
      %v1101 = vadd.f32 %v935, %v1063
      %v1102 = vadd.f32 %v936, %v1066
      %v1103 = vadd.f32 %v937, %v1071
      %v1104 = vadd.f32 %v938, %v1074
      %v1105 = vadd.f32 %v939, %v1079
      %v1106 = vadd.f32 %v940, %v1082
      %v1107 = vadd.f32 %v941, %v1087
      %v1108 = vadd.f32 %v942, %v1090
      %v1109 = vld [vmem:[%s460 + $0x1] sm:$0xff]
      %v1110 = vld [vmem:[%s460 + $0x11] sm:$0xff]
      %v1111 = vld [vmem:[%s460 + $0x21] sm:$0xff]
      %v1112 = vld [vmem:[%s460 + $0x31] sm:$0xff]
      %v1113 = vld [vmem:[%s460 + $0x41] sm:$0xff]
      %v1114 = vld [vmem:[%s460 + $0x51] sm:$0xff]
      %v1115 = vld [vmem:[%s460 + $0x61] sm:$0xff]
      %v1116 = vld [vmem:[%s460 + $0x71] sm:$0xff]
      %v1117 = vld [vmem:[%s460 + $0xa1] sm:$0xff]
      %v1118 = vld [vmem:[%s460 + $0xb1] sm:$0xff]
      %v1119 = vld [vmem:[%s460 + $0xc1] sm:$0xff]
      %v1120 = vld [vmem:[%s460 + $0xd1] sm:$0xff]
      %v1121 = vld [vmem:[%s460 + $0xe1] sm:$0xff]
      %v1122 = vld [vmem:[%s460 + $0xf1] sm:$0xff]
      %v1123 = vld [vmem:[%s460 + $0x101] sm:$0xff]
      %v1124 = vld [vmem:[%s460 + $0x111] sm:$0xff]
      %v1125 = vpack.c.bf16 %v1110, %v1109
      %v1126 = vpack.c.bf16 %v1112, %v1111
      %v1127 = vpack.c.bf16 %v1114, %v1113
      %v1128 = vpack.c.bf16 %v1116, %v1115
      %v1129 = vpack.c.bf16 %v1118, %v1117
      %v1130 = vpack.c.bf16 %v1120, %v1119
      %v1131 = vpack.c.bf16 %v1122, %v1121
      %v1132 = vpack.c.bf16 %v1124, %v1123
      %s1133 = scalar_lea.vmem %s315, 8
      %v1134 = vld [vmem:[%s1133] sm:$0x3]
      %v1136 = vsel %vm408, %v1125, 0
      %v1139 = vsel %vm408, %v1126, 0
      %v1142 = vsel %vm408, %v1127, 0
      %v1145 = vsel %vm408, %v1128, 0
      %v1148 = vsel %vm408, %v1129, 0
      %v1151 = vsel %vm408, %v1130, 0
      %v1154 = vsel %vm408, %v1131, 0
      %v1157 = vsel %vm408, %v1132, 0
      %v1160 = vsel %vm552, %v1134, 0
      %1162 = vmatprep.subr.bf16.mxu0 0
      %1163 = vmatpush1.bf16.msra.mxu0 0
      %1164 = vmatprep.subr.bf16.mxu0 0
      %1165 = vmatpush1.bf16.msra.mxu0 0
      %1166 = vmatprep.subr.bf16.mxu0 0
      %1167 = vmatpush1.bf16.msra.mxu0 0
      %1168 = vmatprep.subr.bf16.mxu0 0
      %1169 = vmatpush1.bf16.msra.mxu0 0
      %1170 = vmatprep.subr.bf16.mxu0 0
      %1171 = vmatpush1.bf16.msra.mxu0 0
      %1172 = vmatprep.subr.bf16.mxu0 0
      %1173 = vmatpush1.bf16.msra.mxu0 0
      %1174 = vmatprep.subr.bf16.mxu0 0
      %1175 = vmatpush1.bf16.msra.mxu0 0
      %1176 = vmatprep.subr.bf16.mxu0 0
      %1177 = vmatpush1.bf16.msra.mxu0 %v1160
      %1178 = vmatprep.subr.bf16.mxu0 0
      %1179 = vmatpush2.bf16.msra.mxu0 0
      %1180 = vmatprep.subr.bf16.mxu0 0
      %1181 = vmatpush2.bf16.msra.mxu0 0
      %1182 = vmatprep.subr.bf16.mxu0 0
      %1183 = vmatpush2.bf16.msra.mxu0 0
      %1184 = vmatprep.subr.bf16.mxu0 0
      %1185 = vmatpush2.bf16.msra.mxu0 0
      %1186 = vmatprep.subr.bf16.mxu0 0
      %1187 = vmatpush2.bf16.msra.mxu0 0
      %1188 = vmatprep.subr.bf16.mxu0 0
      %1189 = vmatpush2.bf16.msra.mxu0 0
      %1190 = vmatprep.subr.bf16.mxu0 0
      %1191 = vmatpush2.bf16.msra.mxu0 0
      %1192 = vmatprep.subr.bf16.mxu0 0
      %1193 = vmatpush2.bf16.msra.mxu0 0
      %1194 = vmatprep.mubr.bf16.mxu0 0
      %1195 = vmatmul.mubr.bf16.gmra.mxu0 %v1136
      %v1196 = vpop.f32.mrf.mxu0
      %v1197 = vadd.f32 0.0, %v1196
      %v1198 = vpop.f32.mrf.mxu0
      %v1199 = vpop.f32.mrf.mxu0
      %v1200 = vadd.f32 0.0, %v1199
      %v1201 = vpop.f32.mrf.mxu0
      %1202 = vmatprep.mubr.bf16.mxu0 0
      %1203 = vmatmul.mubr.bf16.gmra.mxu0 %v1139
      %v1204 = vpop.f32.mrf.mxu0
      %v1205 = vadd.f32 0.0, %v1204
      %v1206 = vpop.f32.mrf.mxu0
      %v1207 = vpop.f32.mrf.mxu0
      %v1208 = vadd.f32 0.0, %v1207
      %v1209 = vpop.f32.mrf.mxu0
      %1210 = vmatprep.mubr.bf16.mxu0 0
      %1211 = vmatmul.mubr.bf16.gmra.mxu0 %v1142
      %v1212 = vpop.f32.mrf.mxu0
      %v1213 = vadd.f32 0.0, %v1212
      %v1214 = vpop.f32.mrf.mxu0
      %v1215 = vpop.f32.mrf.mxu0
      %v1216 = vadd.f32 0.0, %v1215
      %v1217 = vpop.f32.mrf.mxu0
      %1218 = vmatprep.mubr.bf16.mxu0 0
      %1219 = vmatmul.mubr.bf16.gmra.mxu0 %v1145
      %v1220 = vpop.f32.mrf.mxu0
      %v1221 = vadd.f32 0.0, %v1220
      %v1222 = vpop.f32.mrf.mxu0
      %v1223 = vpop.f32.mrf.mxu0
      %v1224 = vadd.f32 0.0, %v1223
      %v1225 = vpop.f32.mrf.mxu0
      %1226 = vmatprep.mubr.bf16.mxu0 0
      %1227 = vmatmul.mubr.bf16.gmra.mxu0 %v1148
      %v1228 = vpop.f32.mrf.mxu0
      %v1229 = vadd.f32 0.0, %v1228
      %v1230 = vpop.f32.mrf.mxu0
      %v1231 = vpop.f32.mrf.mxu0
      %v1232 = vadd.f32 0.0, %v1231
      %v1233 = vpop.f32.mrf.mxu0
      %1234 = vmatprep.mubr.bf16.mxu0 0
      %1235 = vmatmul.mubr.bf16.gmra.mxu0 %v1151
      %v1236 = vpop.f32.mrf.mxu0
      %v1237 = vadd.f32 0.0, %v1236
      %v1238 = vpop.f32.mrf.mxu0
      %v1239 = vpop.f32.mrf.mxu0
      %v1240 = vadd.f32 0.0, %v1239
      %v1241 = vpop.f32.mrf.mxu0
      %1242 = vmatprep.mubr.bf16.mxu0 0
      %1243 = vmatmul.mubr.bf16.gmra.mxu0 %v1154
      %v1244 = vpop.f32.mrf.mxu0
      %v1245 = vadd.f32 0.0, %v1244
      %v1246 = vpop.f32.mrf.mxu0
      %v1247 = vpop.f32.mrf.mxu0
      %v1248 = vadd.f32 0.0, %v1247
      %v1249 = vpop.f32.mrf.mxu0
      %1250 = vmatprep.mubr.bf16.mxu0 0
      %1251 = vmatmul.mubr.bf16.gmra.mxu0 %v1157
      %v1252 = vpop.f32.mrf.mxu0
      %v1253 = vadd.f32 0.0, %v1252
      %v1254 = vpop.f32.mrf.mxu0
      %v1255 = vpop.f32.mrf.mxu0
      %v1256 = vadd.f32 0.0, %v1255
      %v1257 = vpop.f32.mrf.mxu0
      %1258 = vdwg.mxu0
      %v1259 = vadd.f32 %v1093, %v1197
      %v1260 = vadd.f32 %v1094, %v1200
      %v1261 = vadd.f32 %v1095, %v1205
      %v1262 = vadd.f32 %v1096, %v1208
      %v1263 = vadd.f32 %v1097, %v1213
      %v1264 = vadd.f32 %v1098, %v1216
      %v1265 = vadd.f32 %v1099, %v1221
      %v1266 = vadd.f32 %v1100, %v1224
      %v1267 = vadd.f32 %v1101, %v1229
      %v1268 = vadd.f32 %v1102, %v1232
      %v1269 = vadd.f32 %v1103, %v1237
      %v1270 = vadd.f32 %v1104, %v1240
      %v1271 = vadd.f32 %v1105, %v1245
      %v1272 = vadd.f32 %v1106, %v1248
      %v1273 = vadd.f32 %v1107, %v1253
      %v1274 = vadd.f32 %v1108, %v1256
      %v1275 = vld [vmem:[%s460 + $0x2] sm:$0xff]
      %v1276 = vld [vmem:[%s460 + $0x12] sm:$0xff]
      %v1277 = vld [vmem:[%s460 + $0x22] sm:$0xff]
      %v1278 = vld [vmem:[%s460 + $0x32] sm:$0xff]
      %v1279 = vld [vmem:[%s460 + $0x42] sm:$0xff]
      %v1280 = vld [vmem:[%s460 + $0x52] sm:$0xff]
      %v1281 = vld [vmem:[%s460 + $0x62] sm:$0xff]
      %v1282 = vld [vmem:[%s460 + $0x72] sm:$0xff]
      %v1283 = vld [vmem:[%s460 + $0xa2] sm:$0xff]
      %v1284 = vld [vmem:[%s460 + $0xb2] sm:$0xff]
      %v1285 = vld [vmem:[%s460 + $0xc2] sm:$0xff]
      %v1286 = vld [vmem:[%s460 + $0xd2] sm:$0xff]
      %v1287 = vld [vmem:[%s460 + $0xe2] sm:$0xff]
      %v1288 = vld [vmem:[%s460 + $0xf2] sm:$0xff]
      %v1289 = vld [vmem:[%s460 + $0x102] sm:$0xff]
      %v1290 = vld [vmem:[%s460 + $0x112] sm:$0xff]
      %v1291 = vpack.c.bf16 %v1276, %v1275
      %v1292 = vpack.c.bf16 %v1278, %v1277
      %v1293 = vpack.c.bf16 %v1280, %v1279
      %v1294 = vpack.c.bf16 %v1282, %v1281
      %v1295 = vpack.c.bf16 %v1284, %v1283
      %v1296 = vpack.c.bf16 %v1286, %v1285
      %v1297 = vpack.c.bf16 %v1288, %v1287
      %v1298 = vpack.c.bf16 %v1290, %v1289
      %s1299 = scalar_lea.vmem %s315, 10
      %v1300 = vld [vmem:[%s1299] sm:$0x3]
      %v1302 = vsel %vm408, %v1291, 0
      %v1305 = vsel %vm408, %v1292, 0
      %v1308 = vsel %vm408, %v1293, 0
      %v1311 = vsel %vm408, %v1294, 0
      %v1314 = vsel %vm408, %v1295, 0
      %v1317 = vsel %vm408, %v1296, 0
      %v1320 = vsel %vm408, %v1297, 0
      %v1323 = vsel %vm408, %v1298, 0
      %v1326 = vsel %vm552, %v1300, 0
      %1328 = vmatprep.subr.bf16.mxu0 0
      %1329 = vmatpush1.bf16.msra.mxu0 0
      %1330 = vmatprep.subr.bf16.mxu0 0
      %1331 = vmatpush1.bf16.msra.mxu0 0
      %1332 = vmatprep.subr.bf16.mxu0 0
      %1333 = vmatpush1.bf16.msra.mxu0 0
      %1334 = vmatprep.subr.bf16.mxu0 0
      %1335 = vmatpush1.bf16.msra.mxu0 0
      %1336 = vmatprep.subr.bf16.mxu0 0
      %1337 = vmatpush1.bf16.msra.mxu0 0
      %1338 = vmatprep.subr.bf16.mxu0 0
      %1339 = vmatpush1.bf16.msra.mxu0 0
      %1340 = vmatprep.subr.bf16.mxu0 0
      %1341 = vmatpush1.bf16.msra.mxu0 0
      %1342 = vmatprep.subr.bf16.mxu0 0
      %1343 = vmatpush1.bf16.msra.mxu0 %v1326
      %1344 = vmatprep.subr.bf16.mxu0 0
      %1345 = vmatpush2.bf16.msra.mxu0 0
      %1346 = vmatprep.subr.bf16.mxu0 0
      %1347 = vmatpush2.bf16.msra.mxu0 0
      %1348 = vmatprep.subr.bf16.mxu0 0
      %1349 = vmatpush2.bf16.msra.mxu0 0
      %1350 = vmatprep.subr.bf16.mxu0 0
      %1351 = vmatpush2.bf16.msra.mxu0 0
      %1352 = vmatprep.subr.bf16.mxu0 0
      %1353 = vmatpush2.bf16.msra.mxu0 0
      %1354 = vmatprep.subr.bf16.mxu0 0
      %1355 = vmatpush2.bf16.msra.mxu0 0
      %1356 = vmatprep.subr.bf16.mxu0 0
      %1357 = vmatpush2.bf16.msra.mxu0 0
      %1358 = vmatprep.subr.bf16.mxu0 0
      %1359 = vmatpush2.bf16.msra.mxu0 0
      %1360 = vmatprep.mubr.bf16.mxu0 0
      %1361 = vmatmul.mubr.bf16.gmra.mxu0 %v1302
      %v1362 = vpop.f32.mrf.mxu0
      %v1363 = vadd.f32 0.0, %v1362
      %v1364 = vpop.f32.mrf.mxu0
      %v1365 = vpop.f32.mrf.mxu0
      %v1366 = vadd.f32 0.0, %v1365
      %v1367 = vpop.f32.mrf.mxu0
      %1368 = vmatprep.mubr.bf16.mxu0 0
      %1369 = vmatmul.mubr.bf16.gmra.mxu0 %v1305
      %v1370 = vpop.f32.mrf.mxu0
      %v1371 = vadd.f32 0.0, %v1370
      %v1372 = vpop.f32.mrf.mxu0
      %v1373 = vpop.f32.mrf.mxu0
      %v1374 = vadd.f32 0.0, %v1373
      %v1375 = vpop.f32.mrf.mxu0
      %1376 = vmatprep.mubr.bf16.mxu0 0
      %1377 = vmatmul.mubr.bf16.gmra.mxu0 %v1308
      %v1378 = vpop.f32.mrf.mxu0
      %v1379 = vadd.f32 0.0, %v1378
      %v1380 = vpop.f32.mrf.mxu0
      %v1381 = vpop.f32.mrf.mxu0
      %v1382 = vadd.f32 0.0, %v1381
      %v1383 = vpop.f32.mrf.mxu0
      %1384 = vmatprep.mubr.bf16.mxu0 0
      %1385 = vmatmul.mubr.bf16.gmra.mxu0 %v1311
      %v1386 = vpop.f32.mrf.mxu0
      %v1387 = vadd.f32 0.0, %v1386
      %v1388 = vpop.f32.mrf.mxu0
      %v1389 = vpop.f32.mrf.mxu0
      %v1390 = vadd.f32 0.0, %v1389
      %v1391 = vpop.f32.mrf.mxu0
      %1392 = vmatprep.mubr.bf16.mxu0 0
      %1393 = vmatmul.mubr.bf16.gmra.mxu0 %v1314
      %v1394 = vpop.f32.mrf.mxu0
      %v1395 = vadd.f32 0.0, %v1394
      %v1396 = vpop.f32.mrf.mxu0
      %v1397 = vpop.f32.mrf.mxu0
      %v1398 = vadd.f32 0.0, %v1397
      %v1399 = vpop.f32.mrf.mxu0
      %1400 = vmatprep.mubr.bf16.mxu0 0
      %1401 = vmatmul.mubr.bf16.gmra.mxu0 %v1317
      %v1402 = vpop.f32.mrf.mxu0
      %v1403 = vadd.f32 0.0, %v1402
      %v1404 = vpop.f32.mrf.mxu0
      %v1405 = vpop.f32.mrf.mxu0
      %v1406 = vadd.f32 0.0, %v1405
      %v1407 = vpop.f32.mrf.mxu0
      %1408 = vmatprep.mubr.bf16.mxu0 0
      %1409 = vmatmul.mubr.bf16.gmra.mxu0 %v1320
      %v1410 = vpop.f32.mrf.mxu0
      %v1411 = vadd.f32 0.0, %v1410
      %v1412 = vpop.f32.mrf.mxu0
      %v1413 = vpop.f32.mrf.mxu0
      %v1414 = vadd.f32 0.0, %v1413
      %v1415 = vpop.f32.mrf.mxu0
      %1416 = vmatprep.mubr.bf16.mxu0 0
      %1417 = vmatmul.mubr.bf16.gmra.mxu0 %v1323
      %v1418 = vpop.f32.mrf.mxu0
      %v1419 = vadd.f32 0.0, %v1418
      %v1420 = vpop.f32.mrf.mxu0
      %v1421 = vpop.f32.mrf.mxu0
      %v1422 = vadd.f32 0.0, %v1421
      %v1423 = vpop.f32.mrf.mxu0
      %1424 = vdwg.mxu0
      %v1425 = vadd.f32 %v1259, %v1363
      %v1426 = vadd.f32 %v1260, %v1366
      %v1427 = vadd.f32 %v1261, %v1371
      %v1428 = vadd.f32 %v1262, %v1374
      %v1429 = vadd.f32 %v1263, %v1379
      %v1430 = vadd.f32 %v1264, %v1382
      %v1431 = vadd.f32 %v1265, %v1387
      %v1432 = vadd.f32 %v1266, %v1390
      %v1433 = vadd.f32 %v1267, %v1395
      %v1434 = vadd.f32 %v1268, %v1398
      %v1435 = vadd.f32 %v1269, %v1403
      %v1436 = vadd.f32 %v1270, %v1406
      %v1437 = vadd.f32 %v1271, %v1411
      %v1438 = vadd.f32 %v1272, %v1414
      %v1439 = vadd.f32 %v1273, %v1419
      %v1440 = vadd.f32 %v1274, %v1422
      %s1441 = scalar_lea.vmem [#allocation2], 32
      %v1442 = vld [vmem:[%s1441] sm:$0xff]
      %v1443 = vld [vmem:[%s1441 + $0x10] sm:$0xff]
      %v1444 = vld [vmem:[%s1441 + $0x20] sm:$0xff]
      %v1445 = vld [vmem:[%s1441 + $0x30] sm:$0xff]
      %v1446 = vld [vmem:[%s1441 + $0x40] sm:$0xff]
      %v1447 = vld [vmem:[%s1441 + $0x50] sm:$0xff]
      %v1448 = vld [vmem:[%s1441 + $0x60] sm:$0xff]
      %v1449 = vld [vmem:[%s1441 + $0x70] sm:$0xff]
      %v1450 = vld [vmem:[%s1441 + $0xa0] sm:$0xff]
      %v1451 = vld [vmem:[%s1441 + $0xb0] sm:$0xff]
      %v1452 = vld [vmem:[%s1441 + $0xc0] sm:$0xff]
      %v1453 = vld [vmem:[%s1441 + $0xd0] sm:$0xff]
      %v1454 = vld [vmem:[%s1441 + $0xe0] sm:$0xff]
      %v1455 = vld [vmem:[%s1441 + $0xf0] sm:$0xff]
      %v1456 = vld [vmem:[%s1441 + $0x100] sm:$0xff]
      %v1457 = vld [vmem:[%s1441 + $0x110] sm:$0xff]
      %v1458 = vpack.c.bf16 %v1443, %v1442
      %v1459 = vpack.c.bf16 %v1445, %v1444
      %v1460 = vpack.c.bf16 %v1447, %v1446
      %v1461 = vpack.c.bf16 %v1449, %v1448
      %v1462 = vpack.c.bf16 %v1451, %v1450
      %v1463 = vpack.c.bf16 %v1453, %v1452
      %v1464 = vpack.c.bf16 %v1455, %v1454
      %v1465 = vpack.c.bf16 %v1457, %v1456
      %s1466 = scalar_lea.vmem %s315, 12
      %v1467 = vld [vmem:[%s1466] sm:$0x3]
      %v1469 = vsel %vm408, %v1458, 0
      %v1472 = vsel %vm408, %v1459, 0
      %v1475 = vsel %vm408, %v1460, 0
      %v1478 = vsel %vm408, %v1461, 0
      %v1481 = vsel %vm408, %v1462, 0
      %v1484 = vsel %vm408, %v1463, 0
      %v1487 = vsel %vm408, %v1464, 0
      %v1490 = vsel %vm408, %v1465, 0
      %v1493 = vsel %vm552, %v1467, 0
      %1495 = vmatprep.subr.bf16.mxu0 0
      %1496 = vmatpush1.bf16.msra.mxu0 0
      %1497 = vmatprep.subr.bf16.mxu0 0
      %1498 = vmatpush1.bf16.msra.mxu0 0
      %1499 = vmatprep.subr.bf16.mxu0 0
      %1500 = vmatpush1.bf16.msra.mxu0 0
      %1501 = vmatprep.subr.bf16.mxu0 0
      %1502 = vmatpush1.bf16.msra.mxu0 0
      %1503 = vmatprep.subr.bf16.mxu0 0
      %1504 = vmatpush1.bf16.msra.mxu0 0
      %1505 = vmatprep.subr.bf16.mxu0 0
      %1506 = vmatpush1.bf16.msra.mxu0 0
      %1507 = vmatprep.subr.bf16.mxu0 0
      %1508 = vmatpush1.bf16.msra.mxu0 0
      %1509 = vmatprep.subr.bf16.mxu0 0
      %1510 = vmatpush1.bf16.msra.mxu0 %v1493
      %1511 = vmatprep.subr.bf16.mxu0 0
      %1512 = vmatpush2.bf16.msra.mxu0 0
      %1513 = vmatprep.subr.bf16.mxu0 0
      %1514 = vmatpush2.bf16.msra.mxu0 0
      %1515 = vmatprep.subr.bf16.mxu0 0
      %1516 = vmatpush2.bf16.msra.mxu0 0
      %1517 = vmatprep.subr.bf16.mxu0 0
      %1518 = vmatpush2.bf16.msra.mxu0 0
      %1519 = vmatprep.subr.bf16.mxu0 0
      %1520 = vmatpush2.bf16.msra.mxu0 0
      %1521 = vmatprep.subr.bf16.mxu0 0
      %1522 = vmatpush2.bf16.msra.mxu0 0
      %1523 = vmatprep.subr.bf16.mxu0 0
      %1524 = vmatpush2.bf16.msra.mxu0 0
      %1525 = vmatprep.subr.bf16.mxu0 0
      %1526 = vmatpush2.bf16.msra.mxu0 0
      %1527 = vmatprep.mubr.bf16.mxu0 0
      %1528 = vmatmul.mubr.bf16.gmra.mxu0 %v1469
      %v1529 = vpop.f32.mrf.mxu0
      %v1530 = vadd.f32 0.0, %v1529
      %v1531 = vpop.f32.mrf.mxu0
      %v1532 = vpop.f32.mrf.mxu0
      %v1533 = vadd.f32 0.0, %v1532
      %v1534 = vpop.f32.mrf.mxu0
      %1535 = vmatprep.mubr.bf16.mxu0 0
      %1536 = vmatmul.mubr.bf16.gmra.mxu0 %v1472
      %v1537 = vpop.f32.mrf.mxu0
      %v1538 = vadd.f32 0.0, %v1537
      %v1539 = vpop.f32.mrf.mxu0
      %v1540 = vpop.f32.mrf.mxu0
      %v1541 = vadd.f32 0.0, %v1540
      %v1542 = vpop.f32.mrf.mxu0
      %1543 = vmatprep.mubr.bf16.mxu0 0
      %1544 = vmatmul.mubr.bf16.gmra.mxu0 %v1475
      %v1545 = vpop.f32.mrf.mxu0
      %v1546 = vadd.f32 0.0, %v1545
      %v1547 = vpop.f32.mrf.mxu0
      %v1548 = vpop.f32.mrf.mxu0
      %v1549 = vadd.f32 0.0, %v1548
      %v1550 = vpop.f32.mrf.mxu0
      %1551 = vmatprep.mubr.bf16.mxu0 0
      %1552 = vmatmul.mubr.bf16.gmra.mxu0 %v1478
      %v1553 = vpop.f32.mrf.mxu0
      %v1554 = vadd.f32 0.0, %v1553
      %v1555 = vpop.f32.mrf.mxu0
      %v1556 = vpop.f32.mrf.mxu0
      %v1557 = vadd.f32 0.0, %v1556
      %v1558 = vpop.f32.mrf.mxu0
      %1559 = vmatprep.mubr.bf16.mxu0 0
      %1560 = vmatmul.mubr.bf16.gmra.mxu0 %v1481
      %v1561 = vpop.f32.mrf.mxu0
      %v1562 = vadd.f32 0.0, %v1561
      %v1563 = vpop.f32.mrf.mxu0
      %v1564 = vpop.f32.mrf.mxu0
      %v1565 = vadd.f32 0.0, %v1564
      %v1566 = vpop.f32.mrf.mxu0
      %1567 = vmatprep.mubr.bf16.mxu0 0
      %1568 = vmatmul.mubr.bf16.gmra.mxu0 %v1484
      %v1569 = vpop.f32.mrf.mxu0
      %v1570 = vadd.f32 0.0, %v1569
      %v1571 = vpop.f32.mrf.mxu0
      %v1572 = vpop.f32.mrf.mxu0
      %v1573 = vadd.f32 0.0, %v1572
      %v1574 = vpop.f32.mrf.mxu0
      %1575 = vmatprep.mubr.bf16.mxu0 0
      %1576 = vmatmul.mubr.bf16.gmra.mxu0 %v1487
      %v1577 = vpop.f32.mrf.mxu0
      %v1578 = vadd.f32 0.0, %v1577
      %v1579 = vpop.f32.mrf.mxu0
      %v1580 = vpop.f32.mrf.mxu0
      %v1581 = vadd.f32 0.0, %v1580
      %v1582 = vpop.f32.mrf.mxu0
      %1583 = vmatprep.mubr.bf16.mxu0 0
      %1584 = vmatmul.mubr.bf16.gmra.mxu0 %v1490
      %v1585 = vpop.f32.mrf.mxu0
      %v1586 = vadd.f32 0.0, %v1585
      %v1587 = vpop.f32.mrf.mxu0
      %v1588 = vpop.f32.mrf.mxu0
      %v1589 = vadd.f32 0.0, %v1588
      %v1590 = vpop.f32.mrf.mxu0
      %1591 = vdwg.mxu0
      %v1592 = vadd.f32 %v1425, %v1530
      %v1593 = vadd.f32 %v1426, %v1533
      %v1594 = vadd.f32 %v1427, %v1538
      %v1595 = vadd.f32 %v1428, %v1541
      %v1596 = vadd.f32 %v1429, %v1546
      %v1597 = vadd.f32 %v1430, %v1549
      %v1598 = vadd.f32 %v1431, %v1554
      %v1599 = vadd.f32 %v1432, %v1557
      %v1600 = vadd.f32 %v1433, %v1562
      %v1601 = vadd.f32 %v1434, %v1565
      %v1602 = vadd.f32 %v1435, %v1570
      %v1603 = vadd.f32 %v1436, %v1573
      %v1604 = vadd.f32 %v1437, %v1578
      %v1605 = vadd.f32 %v1438, %v1581
      %v1606 = vadd.f32 %v1439, %v1586
      %v1607 = vadd.f32 %v1440, %v1589
      %v1608 = vld [vmem:[%s1441 + $0x1] sm:$0xff]
      %v1609 = vld [vmem:[%s1441 + $0x11] sm:$0xff]
      %v1610 = vld [vmem:[%s1441 + $0x21] sm:$0xff]
      %v1611 = vld [vmem:[%s1441 + $0x31] sm:$0xff]
      %v1612 = vld [vmem:[%s1441 + $0x41] sm:$0xff]
      %v1613 = vld [vmem:[%s1441 + $0x51] sm:$0xff]
      %v1614 = vld [vmem:[%s1441 + $0x61] sm:$0xff]
      %v1615 = vld [vmem:[%s1441 + $0x71] sm:$0xff]
      %v1616 = vld [vmem:[%s1441 + $0xa1] sm:$0xff]
      %v1617 = vld [vmem:[%s1441 + $0xb1] sm:$0xff]
      %v1618 = vld [vmem:[%s1441 + $0xc1] sm:$0xff]
      %v1619 = vld [vmem:[%s1441 + $0xd1] sm:$0xff]
      %v1620 = vld [vmem:[%s1441 + $0xe1] sm:$0xff]
      %v1621 = vld [vmem:[%s1441 + $0xf1] sm:$0xff]
      %v1622 = vld [vmem:[%s1441 + $0x101] sm:$0xff]
      %v1623 = vld [vmem:[%s1441 + $0x111] sm:$0xff]
      %v1624 = vpack.c.bf16 %v1609, %v1608
      %v1625 = vpack.c.bf16 %v1611, %v1610
      %v1626 = vpack.c.bf16 %v1613, %v1612
      %v1627 = vpack.c.bf16 %v1615, %v1614
      %v1628 = vpack.c.bf16 %v1617, %v1616
      %v1629 = vpack.c.bf16 %v1619, %v1618
      %v1630 = vpack.c.bf16 %v1621, %v1620
      %v1631 = vpack.c.bf16 %v1623, %v1622
      %s1632 = scalar_lea.vmem %s315, 14
      %v1633 = vld [vmem:[%s1632] sm:$0x3]
      %v1635 = vsel %vm408, %v1624, 0
      %v1638 = vsel %vm408, %v1625, 0
      %v1641 = vsel %vm408, %v1626, 0
      %v1644 = vsel %vm408, %v1627, 0
      %v1647 = vsel %vm408, %v1628, 0
      %v1650 = vsel %vm408, %v1629, 0
      %v1653 = vsel %vm408, %v1630, 0
      %v1656 = vsel %vm408, %v1631, 0
      %v1659 = vsel %vm552, %v1633, 0
      %1661 = vmatprep.subr.bf16.mxu0 0
      %1662 = vmatpush1.bf16.msra.mxu0 0
      %1663 = vmatprep.subr.bf16.mxu0 0
      %1664 = vmatpush1.bf16.msra.mxu0 0
      %1665 = vmatprep.subr.bf16.mxu0 0
      %1666 = vmatpush1.bf16.msra.mxu0 0
      %1667 = vmatprep.subr.bf16.mxu0 0
      %1668 = vmatpush1.bf16.msra.mxu0 0
      %1669 = vmatprep.subr.bf16.mxu0 0
      %1670 = vmatpush1.bf16.msra.mxu0 0
      %1671 = vmatprep.subr.bf16.mxu0 0
      %1672 = vmatpush1.bf16.msra.mxu0 0
      %1673 = vmatprep.subr.bf16.mxu0 0
      %1674 = vmatpush1.bf16.msra.mxu0 0
      %1675 = vmatprep.subr.bf16.mxu0 0
      %1676 = vmatpush1.bf16.msra.mxu0 %v1659
      %1677 = vmatprep.subr.bf16.mxu0 0
      %1678 = vmatpush2.bf16.msra.mxu0 0
      %1679 = vmatprep.subr.bf16.mxu0 0
      %1680 = vmatpush2.bf16.msra.mxu0 0
      %1681 = vmatprep.subr.bf16.mxu0 0
      %1682 = vmatpush2.bf16.msra.mxu0 0
      %1683 = vmatprep.subr.bf16.mxu0 0
      %1684 = vmatpush2.bf16.msra.mxu0 0
      %1685 = vmatprep.subr.bf16.mxu0 0
      %1686 = vmatpush2.bf16.msra.mxu0 0
      %1687 = vmatprep.subr.bf16.mxu0 0
      %1688 = vmatpush2.bf16.msra.mxu0 0
      %1689 = vmatprep.subr.bf16.mxu0 0
      %1690 = vmatpush2.bf16.msra.mxu0 0
      %1691 = vmatprep.subr.bf16.mxu0 0
      %1692 = vmatpush2.bf16.msra.mxu0 0
      %1693 = vmatprep.mubr.bf16.mxu0 0
      %1694 = vmatmul.mubr.bf16.gmra.mxu0 %v1635
      %v1695 = vpop.f32.mrf.mxu0
      %v1696 = vadd.f32 0.0, %v1695
      %v1697 = vpop.f32.mrf.mxu0
      %v1698 = vpop.f32.mrf.mxu0
      %v1699 = vadd.f32 0.0, %v1698
      %v1700 = vpop.f32.mrf.mxu0
      %1701 = vmatprep.mubr.bf16.mxu0 0
      %1702 = vmatmul.mubr.bf16.gmra.mxu0 %v1638
      %v1703 = vpop.f32.mrf.mxu0
      %v1704 = vadd.f32 0.0, %v1703
      %v1705 = vpop.f32.mrf.mxu0
      %v1706 = vpop.f32.mrf.mxu0
      %v1707 = vadd.f32 0.0, %v1706
      %v1708 = vpop.f32.mrf.mxu0
      %1709 = vmatprep.mubr.bf16.mxu0 0
      %1710 = vmatmul.mubr.bf16.gmra.mxu0 %v1641
      %v1711 = vpop.f32.mrf.mxu0
      %v1712 = vadd.f32 0.0, %v1711
      %v1713 = vpop.f32.mrf.mxu0
      %v1714 = vpop.f32.mrf.mxu0
      %v1715 = vadd.f32 0.0, %v1714
      %v1716 = vpop.f32.mrf.mxu0
      %1717 = vmatprep.mubr.bf16.mxu0 0
      %1718 = vmatmul.mubr.bf16.gmra.mxu0 %v1644
      %v1719 = vpop.f32.mrf.mxu0
      %v1720 = vadd.f32 0.0, %v1719
      %v1721 = vpop.f32.mrf.mxu0
      %v1722 = vpop.f32.mrf.mxu0
      %v1723 = vadd.f32 0.0, %v1722
      %v1724 = vpop.f32.mrf.mxu0
      %1725 = vmatprep.mubr.bf16.mxu0 0
      %1726 = vmatmul.mubr.bf16.gmra.mxu0 %v1647
      %v1727 = vpop.f32.mrf.mxu0
      %v1728 = vadd.f32 0.0, %v1727
      %v1729 = vpop.f32.mrf.mxu0
      %v1730 = vpop.f32.mrf.mxu0
      %v1731 = vadd.f32 0.0, %v1730
      %v1732 = vpop.f32.mrf.mxu0
      %1733 = vmatprep.mubr.bf16.mxu0 0
      %1734 = vmatmul.mubr.bf16.gmra.mxu0 %v1650
      %v1735 = vpop.f32.mrf.mxu0
      %v1736 = vadd.f32 0.0, %v1735
      %v1737 = vpop.f32.mrf.mxu0
      %v1738 = vpop.f32.mrf.mxu0
      %v1739 = vadd.f32 0.0, %v1738
      %v1740 = vpop.f32.mrf.mxu0
      %1741 = vmatprep.mubr.bf16.mxu0 0
      %1742 = vmatmul.mubr.bf16.gmra.mxu0 %v1653
      %v1743 = vpop.f32.mrf.mxu0
      %v1744 = vadd.f32 0.0, %v1743
      %v1745 = vpop.f32.mrf.mxu0
      %v1746 = vpop.f32.mrf.mxu0
      %v1747 = vadd.f32 0.0, %v1746
      %v1748 = vpop.f32.mrf.mxu0
      %1749 = vmatprep.mubr.bf16.mxu0 0
      %1750 = vmatmul.mubr.bf16.gmra.mxu0 %v1656
      %v1751 = vpop.f32.mrf.mxu0
      %v1752 = vadd.f32 0.0, %v1751
      %v1753 = vpop.f32.mrf.mxu0
      %v1754 = vpop.f32.mrf.mxu0
      %v1755 = vadd.f32 0.0, %v1754
      %v1756 = vpop.f32.mrf.mxu0
      %1757 = vdwg.mxu0
      %v1758 = vadd.f32 %v1592, %v1696
      %v1759 = vadd.f32 %v1593, %v1699
      %v1760 = vadd.f32 %v1594, %v1704
      %v1761 = vadd.f32 %v1595, %v1707
      %v1762 = vadd.f32 %v1596, %v1712
      %v1763 = vadd.f32 %v1597, %v1715
      %v1764 = vadd.f32 %v1598, %v1720
      %v1765 = vadd.f32 %v1599, %v1723
      %v1766 = vadd.f32 %v1600, %v1728
      %v1767 = vadd.f32 %v1601, %v1731
      %v1768 = vadd.f32 %v1602, %v1736
      %v1769 = vadd.f32 %v1603, %v1739
      %v1770 = vadd.f32 %v1604, %v1744
      %v1771 = vadd.f32 %v1605, %v1747
      %v1772 = vadd.f32 %v1606, %v1752
      %v1773 = vadd.f32 %v1607, %v1755
      %v1774 = vld [vmem:[%s1441 + $0x2] sm:$0xff]
      %v1775 = vld [vmem:[%s1441 + $0x12] sm:$0xff]
      %v1776 = vld [vmem:[%s1441 + $0x22] sm:$0xff]
      %v1777 = vld [vmem:[%s1441 + $0x32] sm:$0xff]
      %v1778 = vld [vmem:[%s1441 + $0x42] sm:$0xff]
      %v1779 = vld [vmem:[%s1441 + $0x52] sm:$0xff]
      %v1780 = vld [vmem:[%s1441 + $0x62] sm:$0xff]
      %v1781 = vld [vmem:[%s1441 + $0x72] sm:$0xff]
      %v1782 = vld [vmem:[%s1441 + $0xa2] sm:$0xff]
      %v1783 = vld [vmem:[%s1441 + $0xb2] sm:$0xff]
      %v1784 = vld [vmem:[%s1441 + $0xc2] sm:$0xff]
      %v1785 = vld [vmem:[%s1441 + $0xd2] sm:$0xff]
      %v1786 = vld [vmem:[%s1441 + $0xe2] sm:$0xff]
      %v1787 = vld [vmem:[%s1441 + $0xf2] sm:$0xff]
      %v1788 = vld [vmem:[%s1441 + $0x102] sm:$0xff]
      %v1789 = vld [vmem:[%s1441 + $0x112] sm:$0xff]
      %v1790 = vpack.c.bf16 %v1775, %v1774
      %v1791 = vpack.c.bf16 %v1777, %v1776
      %v1792 = vpack.c.bf16 %v1779, %v1778
      %v1793 = vpack.c.bf16 %v1781, %v1780
      %v1794 = vpack.c.bf16 %v1783, %v1782
      %v1795 = vpack.c.bf16 %v1785, %v1784
      %v1796 = vpack.c.bf16 %v1787, %v1786
      %v1797 = vpack.c.bf16 %v1789, %v1788
      %s1798 = scalar_lea.vmem %s315, 16
      %v1799 = vld [vmem:[%s1798] sm:$0x3]
      %v1801 = vsel %vm408, %v1790, 0
      %v1804 = vsel %vm408, %v1791, 0
      %v1807 = vsel %vm408, %v1792, 0
      %v1810 = vsel %vm408, %v1793, 0
      %v1813 = vsel %vm408, %v1794, 0
      %v1816 = vsel %vm408, %v1795, 0
      %v1819 = vsel %vm408, %v1796, 0
      %v1822 = vsel %vm408, %v1797, 0
      %v1825 = vsel %vm552, %v1799, 0
      %1827 = vmatprep.subr.bf16.mxu0 0
      %1828 = vmatpush1.bf16.msra.mxu0 0
      %1829 = vmatprep.subr.bf16.mxu0 0
      %1830 = vmatpush1.bf16.msra.mxu0 0
      %1831 = vmatprep.subr.bf16.mxu0 0
      %1832 = vmatpush1.bf16.msra.mxu0 0
      %1833 = vmatprep.subr.bf16.mxu0 0
      %1834 = vmatpush1.bf16.msra.mxu0 0
      %1835 = vmatprep.subr.bf16.mxu0 0
      %1836 = vmatpush1.bf16.msra.mxu0 0
      %1837 = vmatprep.subr.bf16.mxu0 0
      %1838 = vmatpush1.bf16.msra.mxu0 0
      %1839 = vmatprep.subr.bf16.mxu0 0
      %1840 = vmatpush1.bf16.msra.mxu0 0
      %1841 = vmatprep.subr.bf16.mxu0 0
      %1842 = vmatpush1.bf16.msra.mxu0 %v1825
      %1843 = vmatprep.subr.bf16.mxu0 0
      %1844 = vmatpush2.bf16.msra.mxu0 0
      %1845 = vmatprep.subr.bf16.mxu0 0
      %1846 = vmatpush2.bf16.msra.mxu0 0
      %1847 = vmatprep.subr.bf16.mxu0 0
      %1848 = vmatpush2.bf16.msra.mxu0 0
      %1849 = vmatprep.subr.bf16.mxu0 0
      %1850 = vmatpush2.bf16.msra.mxu0 0
      %1851 = vmatprep.subr.bf16.mxu0 0
      %1852 = vmatpush2.bf16.msra.mxu0 0
      %1853 = vmatprep.subr.bf16.mxu0 0
      %1854 = vmatpush2.bf16.msra.mxu0 0
      %1855 = vmatprep.subr.bf16.mxu0 0
      %1856 = vmatpush2.bf16.msra.mxu0 0
      %1857 = vmatprep.subr.bf16.mxu0 0
      %1858 = vmatpush2.bf16.msra.mxu0 0
      %1859 = vmatprep.mubr.bf16.mxu0 0
      %1860 = vmatmul.mubr.bf16.gmra.mxu0 %v1801
      %v1861 = vpop.f32.mrf.mxu0
      %v1862 = vadd.f32 0.0, %v1861
      %v1863 = vpop.f32.mrf.mxu0
      %v1864 = vpop.f32.mrf.mxu0
      %v1865 = vadd.f32 0.0, %v1864
      %v1866 = vpop.f32.mrf.mxu0
      %1867 = vmatprep.mubr.bf16.mxu0 0
      %1868 = vmatmul.mubr.bf16.gmra.mxu0 %v1804
      %v1869 = vpop.f32.mrf.mxu0
      %v1870 = vadd.f32 0.0, %v1869
      %v1871 = vpop.f32.mrf.mxu0
      %v1872 = vpop.f32.mrf.mxu0
      %v1873 = vadd.f32 0.0, %v1872
      %v1874 = vpop.f32.mrf.mxu0
      %1875 = vmatprep.mubr.bf16.mxu0 0
      %1876 = vmatmul.mubr.bf16.gmra.mxu0 %v1807
      %v1877 = vpop.f32.mrf.mxu0
      %v1878 = vadd.f32 0.0, %v1877
      %v1879 = vpop.f32.mrf.mxu0
      %v1880 = vpop.f32.mrf.mxu0
      %v1881 = vadd.f32 0.0, %v1880
      %v1882 = vpop.f32.mrf.mxu0
      %1883 = vmatprep.mubr.bf16.mxu0 0
      %1884 = vmatmul.mubr.bf16.gmra.mxu0 %v1810
      %v1885 = vpop.f32.mrf.mxu0
      %v1886 = vadd.f32 0.0, %v1885
      %v1887 = vpop.f32.mrf.mxu0
      %v1888 = vpop.f32.mrf.mxu0
      %v1889 = vadd.f32 0.0, %v1888
      %v1890 = vpop.f32.mrf.mxu0
      %1891 = vmatprep.mubr.bf16.mxu0 0
      %1892 = vmatmul.mubr.bf16.gmra.mxu0 %v1813
      %v1893 = vpop.f32.mrf.mxu0
      %v1894 = vadd.f32 0.0, %v1893
      %v1895 = vpop.f32.mrf.mxu0
      %v1896 = vpop.f32.mrf.mxu0
      %v1897 = vadd.f32 0.0, %v1896
      %v1898 = vpop.f32.mrf.mxu0
      %1899 = vmatprep.mubr.bf16.mxu0 0
      %1900 = vmatmul.mubr.bf16.gmra.mxu0 %v1816
      %v1901 = vpop.f32.mrf.mxu0
      %v1902 = vadd.f32 0.0, %v1901
      %v1903 = vpop.f32.mrf.mxu0
      %v1904 = vpop.f32.mrf.mxu0
      %v1905 = vadd.f32 0.0, %v1904
      %v1906 = vpop.f32.mrf.mxu0
      %1907 = vmatprep.mubr.bf16.mxu0 0
      %1908 = vmatmul.mubr.bf16.gmra.mxu0 %v1819
      %v1909 = vpop.f32.mrf.mxu0
      %v1910 = vadd.f32 0.0, %v1909
      %v1911 = vpop.f32.mrf.mxu0
      %v1912 = vpop.f32.mrf.mxu0
      %v1913 = vadd.f32 0.0, %v1912
      %v1914 = vpop.f32.mrf.mxu0
      %1915 = vmatprep.mubr.bf16.mxu0 0
      %1916 = vmatmul.mubr.bf16.gmra.mxu0 %v1822
      %v1917 = vpop.f32.mrf.mxu0
      %v1918 = vadd.f32 0.0, %v1917
      %v1919 = vpop.f32.mrf.mxu0
      %v1920 = vpop.f32.mrf.mxu0
      %v1921 = vadd.f32 0.0, %v1920
      %v1922 = vpop.f32.mrf.mxu0
      %1923 = vdwg.mxu0
      %v1924 = vadd.f32 %v1758, %v1862
      %v1925 = vadd.f32 %v1759, %v1865
      %v1926 = vadd.f32 %v1760, %v1870
      %v1927 = vadd.f32 %v1761, %v1873
      %v1928 = vadd.f32 %v1762, %v1878
      %v1929 = vadd.f32 %v1763, %v1881
      %v1930 = vadd.f32 %v1764, %v1886
      %v1931 = vadd.f32 %v1765, %v1889
      %v1932 = vadd.f32 %v1766, %v1894
      %v1933 = vadd.f32 %v1767, %v1897
      %v1934 = vadd.f32 %v1768, %v1902
      %v1935 = vadd.f32 %v1769, %v1905
      %v1936 = vadd.f32 %v1770, %v1910
      %v1937 = vadd.f32 %v1771, %v1913
      %v1938 = vadd.f32 %v1772, %v1918
      %v1939 = vadd.f32 %v1773, %v1921
      %v1940 = vld [vmem:[%s318] sm:$0x1]
      %v1942 = vlaneseq
      %v1943 = vshrl.u32 %v1942, 7
      %v1944 = vsub.s32 0, %v1943
      %v1945 = vrot.slane %v1940, %v1944
      %v1947 = vadd.f32 %v1924, %v1945
      %v1948 = vadd.f32 %v1925, %v1945
      %v1949 = vadd.f32 %v1926, %v1945
      %v1950 = vadd.f32 %v1927, %v1945
      %v1951 = vadd.f32 %v1928, %v1945
      %v1952 = vadd.f32 %v1929, %v1945
      %v1953 = vadd.f32 %v1930, %v1945
      %v1954 = vadd.f32 %v1931, %v1945
      %v1955 = vadd.f32 %v1932, %v1945
      %v1956 = vadd.f32 %v1933, %v1945
      %v1957 = vadd.f32 %v1934, %v1945
      %v1958 = vadd.f32 %v1935, %v1945
      %v1959 = vadd.f32 %v1936, %v1945
      %v1960 = vadd.f32 %v1937, %v1945
      %v1961 = vadd.f32 %v1938, %v1945
      %v1962 = vadd.f32 %v1939, %v1945
      %vm1963 = vcmask 64512
      %1964 = vst.msk [vmem:[%s327] sm:$0xff] %vm1963, %v1947
      %1965 = vst.msk [vmem:[%s327 + $0x8] sm:$0xff] %vm1963, %v1948
      %1966 = vst.msk [vmem:[%s327 + $0x10] sm:$0xff] %vm1963, %v1949
      %1967 = vst.msk [vmem:[%s327 + $0x18] sm:$0xff] %vm1963, %v1950
      %1968 = vst.msk [vmem:[%s327 + $0x20] sm:$0xff] %vm1963, %v1951
      %1969 = vst.msk [vmem:[%s327 + $0x28] sm:$0xff] %vm1963, %v1952
      %1970 = vst.msk [vmem:[%s327 + $0x30] sm:$0xff] %vm1963, %v1953
      %1971 = vst.msk [vmem:[%s327 + $0x38] sm:$0xff] %vm1963, %v1954
      %1972 = vst.msk [vmem:[%s327 + $0x40] sm:$0xff] %vm1963, %v1955
      %1973 = vst.msk [vmem:[%s327 + $0x48] sm:$0xff] %vm1963, %v1956
      %1974 = vst.msk [vmem:[%s327 + $0x50] sm:$0xff] %vm1963, %v1957
      %1975 = vst.msk [vmem:[%s327 + $0x58] sm:$0xff] %vm1963, %v1958
      %1976 = vst.msk [vmem:[%s327 + $0x60] sm:$0xff] %vm1963, %v1959
      %1977 = vst.msk [vmem:[%s327 + $0x68] sm:$0xff] %vm1963, %v1960
      %1978 = vst.msk [vmem:[%s327 + $0x70] sm:$0xff] %vm1963, %v1961
      %1979 = vst.msk [vmem:[%s327 + $0x78] sm:$0xff] %vm1963, %v1962
      %s1980 = smul.u32 16, %s21
      %p1981 = scmp.lt.s32.totalorder %s20, 3
      %s1982 = scalar_select %p1981, %s20, 3
      %p1983 = scmp.lt.s32.totalorder %s1980, 15
      %s1984 = scalar_select %p1983, %s1980, 15
      %s1985 = smul.addr %s1982, 16
      %s1986 = sadd.s32 %s1984, %s1985
      %s1987 = smul.addr %s1986, 8
      %s1988 = scalar_lea.vmem %s5, %s1987
      // Predicated region
      $region41: #{tpu_custom_call.1} parent=39 // pred_check
        %p1989 = pneg %p180
      $region42: #{tpu_custom_call.1} parent=39 // pred_check_branch
        %1991 = sbr.rel (%p1989) target = $region44
      $region43: #{tpu_custom_call.1} parent=39 // pred_region
        %s1992 = smul.u32 16, %s21
      $region44: #{tpu_custom_call.1} parent=39 // pred_fallthru
        _
    $region40: #{tpu_custom_call.1} parent=5 // pred_fallthru
      _
    %p1993 = scmp.le.s32.totalorder 2, %s11
    // Predicated region
    $region45: #{tpu_custom_call.1} parent=5 // pred_check
      %p1994 = pneg %p1993
    $region46: #{tpu_custom_call.1} parent=5 // pred_check_branch
      %1996 = sbr.rel (%p1994) target = $region48
    $region47: #{tpu_custom_call.1} parent=5 // pred_region
      %s1997 = ssub.s32 %s11, 2
      // Predicated region
      $region49: #{tpu_custom_call.1} parent=47 // pred_check
        %p1998 = pneg %p186
      $region50: #{tpu_custom_call.1} parent=47 // pred_check_branch
        %2000 = sbr.rel (%p1998) target = $region52
      $region51: #{tpu_custom_call.1} parent=47 // pred_region
        %s2001 = smul.u32 16, %s23
        %p2002 = scmp.lt.s32.totalorder %s22, 3
        %s2003 = scalar_select %p2002, %s22, 3
        %p2004 = scmp.lt.s32.totalorder %s2001, 15
        %s2005 = scalar_select %p2004, %s2001, 15
        %s2006 = smul.addr %s2003, 16
        %s2007 = sadd.s32 %s2005, %s2006
        %s2008 = smul.addr %s2007, 8
        %s2009 = scalar_lea.vmem %s5, %s2008
      $region52: #{tpu_custom_call.1} parent=47 // pred_fallthru
        _
    $region48: #{tpu_custom_call.1} parent=5 // pred_fallthru
      _
  $region6: #{tpu_custom_call.1} parent=0 // loop_footer
    %s15 = sadd.s32 1, %s11
  $region7: #{tpu_custom_call.1} parent=0 // loop_footer_branch
    %10 = sbr.rel target = $region3
  $region8: #{tpu_custom_call.1} parent=0 // loop_exit
    _

</llo_original>
